<compile_context>
chip_gen: v7x
topology: tpu7x:2x2x1
jax: 0.10.0
libtpu: 0.0.40
codegen_flags: <defaults>
</compile_context>

<pallas_src>
import functools

import jax
import jax.numpy as jnp
from jax.experimental import pallas as pl
from jax.experimental.pallas import tpu as pltpu

LANES = 128


def _round_up(x, m):
    return ((x + m - 1) // m) * m


def weight_net_kernel(params_ref, u_ref, out_ref, *, half_dim):
    # params_ref : SMEM (3*H + 1,) f32 -> [w(0:H), r(H:2H), phi(2H:3H), bias]
    # u_ref      : VMEM (tile_rows, 128) f32, dense batch-slab tile
    # out_ref    : VMEM (tile_rows, 128) f32
    H = half_dim
    u = u_ref[...]
    # Single hoisted scalar->vector broadcast of the bias (loop-invariant).
    acc = jnp.full(u.shape, params_ref[3 * H], dtype=jnp.float32)
    # Unrolled per-frequency accumulation (H is small, e.g. 16). Per iteration:
    # one scalar-broadcast FMA, one sin, one scalar-broadcast multiply-accumulate.
    for h in range(H):
        w_h = params_ref[h]
        r_h = params_ref[H + h]
        phi_h = params_ref[2 * H + h]
        acc = acc + r_h * jnp.sin(u * w_h + phi_h)
    out_ref[...] = acc


def _fold_params(fourier_w, fc_w, fc_b):
    """Fold cat(sin, cos) @ fc_w.T + fc_b into  sum_h r_h*sin(w_h*u + phi_h) + b.

    Uses a*sin(x) + b*cos(x) == sqrt(a^2+b^2) * sin(x + atan2(b, a)); 2*pi folded
    into the frequencies. Static-parameter work, done once in XLA, all f32.
    """
    H = fourier_w.shape[-1]
    w_sin = fc_w.reshape(-1)[:H].astype(jnp.float32)
    w_cos = fc_w.reshape(-1)[H:].astype(jnp.float32)
    w = fourier_w.reshape(H).astype(jnp.float32) * (2.0 * jnp.pi)
    r = jnp.sqrt(w_sin * w_sin + w_cos * w_cos)
    phi = jnp.arctan2(w_cos, w_sin)            # atan2(0, 0) = 0 and r = 0 -> harmless
    fb = fc_b.reshape(1).astype(jnp.float32)
    return w, r, phi, fb


def _folded_small_batch(u, w, r, phi, fb):
    # Small-B fast path: pallas_call fixed overhead dominates at this size; XLA fuses
    # this straight into whatever consumes the (B,) output.
    theta = u[:, None].astype(jnp.float32) * w[None, :] + phi[None, :]
    return jnp.sum(r[None, :] * jnp.sin(theta), axis=-1) + fb[0]


def weight_network_forward(u, fourier_w, fc_w, fc_b, *, block_rows=64,
                           small_batch_threshold=1024, force_pallas=False):
    """u: (B,), fourier_w: (1, H), fc_w: (1, 2H), fc_b: (1,) -> (B,) (0-d if B == 1)."""
    B = u.shape[0]
    H = fourier_w.shape[-1]
    w, r, phi, fb = _fold_params(fourier_w, fc_w, fc_b)

    if not force_pallas and B < small_batch_threshold:
        out = _folded_small_batch(u, w, r, phi, fb)
        return out.reshape(()) if B == 1 else out      # match torch .squeeze()

    # ---------------- Pallas path: dense (rows, 128) batch slab ----------------
    rows = pl.cdiv(B, LANES)
    if rows >= 16:
        # Guarantee >= 2 grid steps so v7x's 2 TensorCores both get work; tile_rows
        # is a multiple of 8 and capped at block_rows (default 64 -> 8192 elem/step).
        tile_rows = min(block_rows, _round_up(pl.cdiv(rows, 2), 8))
    else:
        tile_rows = _round_up(rows, 8)
    tile_rows = max(tile_rows, 8)
    rows_p = _round_up(rows, tile_rows)
    Bp = rows_p * LANES

    # Pad the batch and lay it out as a dense 2-D slab (pad lanes compute on zeros and
    # are sliced away afterwards -- purely per-lane math, so no masking needed).
    u_slab = jnp.pad(u.astype(jnp.float32), (0, Bp - B)).reshape(rows_p, LANES)
    params = jnp.concatenate([w, r, phi, fb])          # (3H + 1,) scalars -> SMEM

    kernel = functools.partial(weight_net_kernel, half_dim=H)
    out = pl.pallas_call(
        kernel,
        out_shape=jax.ShapeDtypeStruct((rows_p, LANES), jnp.float32),
        grid=(rows_p // tile_rows,),
        in_specs=[
            pl.BlockSpec(memory_space=pltpu.MemorySpace.SMEM),       # folded params
            pl.BlockSpec((tile_rows, LANES), lambda i: (i, 0)),      # u slab tile
        ],
        out_specs=pl.BlockSpec((tile_rows, LANES), lambda i: (i, 0)),
        compiler_params=pltpu.CompilerParams(
            dimension_semantics=("parallel",)),                      # v7x: 2 TCs split B
    )(params, u_slab)

    out_flat = out.reshape(Bp)[:B]
    return out_flat.reshape(()) if B == 1 else out_flat


def weight_network_ref(u, fourier_w, fc_w, fc_b):
    """Pure-JAX reference mirroring the PyTorch module exactly."""
    freqs = u[:, None] * fourier_w * (2.0 * jnp.pi)
    fouriered = jnp.concatenate([jnp.sin(freqs), jnp.cos(freqs)], axis=-1)
    return (fouriered @ fc_w.T + fc_b).squeeze()


if __name__ == "__main__":
    emb_dim = 32
    half_dim = emb_dim // 2

    key = jax.random.PRNGKey(0)
    k_u, k_w, k_fw, k_fb = jax.random.split(key, 4)

    fourier_w = jax.random.normal(k_w, (1, half_dim), jnp.float32)   # registered buffer
    fc_w0 = jnp.zeros((1, emb_dim), jnp.float32)                     # nn.init.zeros_
    fc_b0 = jnp.zeros((1,), jnp.float32)                             # nn.init.zeros_
    fc_w = jax.random.normal(k_fw, (1, emb_dim), jnp.float32)
    fc_b = jax.random.normal(k_fb, (1,), jnp.float32)

    # 1) Module as constructed (zero fc), small batch, forced through the Pallas path.
    B = 8
    u = jax.random.uniform(k_u, (B,), dtype=jnp.float32)
    out = jax.block_until_ready(
        weight_network_forward(u, fourier_w, fc_w0, fc_b0, force_pallas=True))
    ref = weight_network_ref(u, fourier_w, fc_w0, fc_b0)
    assert out.shape == (B,), out.shape
    assert jnp.allclose(out, ref, atol=1e-4, rtol=1e-4), (out, ref)

    # 2) Non-zero fc params, B not a multiple of 128 (exercises padding + r/phi fold).
    B2 = 300
    u2 = jax.random.uniform(jax.random.PRNGKey(2), (B2,), dtype=jnp.float32)
    out2 = jax.block_until_ready(
        weight_network_forward(u2, fourier_w, fc_w, fc_b, force_pallas=True))
    ref2 = weight_network_ref(u2, fourier_w, fc_w, fc_b)
    assert out2.shape == (B2,), out2.shape
    assert jnp.allclose(out2, ref2, atol=1e-4, rtol=1e-4), (out2, ref2)

    # 3) Larger batch: default dispatch takes the Pallas path with a multi-step
    #    "parallel" grid (>= 2 steps for v7x core splitting).
    B3 = 4096
    u3 = jax.random.uniform(jax.random.PRNGKey(3), (B3,), dtype=jnp.float32)
    out3 = jax.block_until_ready(weight_network_forward(u3, fourier_w, fc_w, fc_b))
    ref3 = weight_network_ref(u3, fourier_w, fc_w, fc_b)
    assert out3.shape == (B3,), out3.shape
    assert jnp.allclose(out3, ref3, atol=1e-4, rtol=1e-4), (out3, ref3)

    # 4) Small-batch default dispatch (fused-XLA fast path) matches the reference too.
    out4 = jax.block_until_ready(weight_network_forward(u, fourier_w, fc_w, fc_b))
    assert jnp.allclose(out4, weight_network_ref(u, fourier_w, fc_w, fc_b),
                        atol=1e-4, rtol=1e-4)

    # 5) B == 1 matches torch .squeeze() semantics (0-d result).
    out5 = jax.block_until_ready(
        weight_network_forward(u[:1], fourier_w, fc_w, fc_b, force_pallas=True))
    assert out5.shape == (), out5.shape
    assert jnp.allclose(out5, weight_network_ref(u[:1], fourier_w, fc_w, fc_b),
                        atol=1e-4, rtol=1e-4)

    print("KERNEL_OK")
</pallas_src>

<mosaic_0001>
module attributes {stable_mosaic.version = 11 : i64} {
  func.func @weight_net_kernel(%arg0: i32, %arg1: memref<49xf32, #tpu.memory_space<smem>>, %arg2: memref<8x128xf32, #tpu.memory_space<vmem>>, %arg3: memref<8x128xf32, #tpu.memory_space<vmem>>) attributes {dimension_semantics = [#tpu.dimension_semantics<parallel>], iteration_bounds = array<i64: 1>, scalar_prefetch = 0 : i64, scratch_operands = 0 : i64, tpu.core_type = #tpu.core_type<tc>, window_params = [{transform_indices = @transform_0, window_bounds = array<i64: 49>}, {transform_indices = @transform_1, window_bounds = array<i64: 8, 128>}, {transform_indices = @transform_2, window_bounds = array<i64: 8, 128>}]} {
    %c0 = arith.constant 0 : index
    %c0_0 = arith.constant 0 : index
    %0 = vector.load %arg2[%c0, %c0_0] : memref<8x128xf32, #tpu.memory_space<vmem>>, vector<8x128xf32>
    %c48 = arith.constant 48 : index
    %1 = memref.load %arg1[%c48] : memref<49xf32, #tpu.memory_space<smem>>
    %2 = vector.broadcast %1 : f32 to vector<8x128xf32>
    %c0_1 = arith.constant 0 : index
    %3 = memref.load %arg1[%c0_1] : memref<49xf32, #tpu.memory_space<smem>>
    %c16 = arith.constant 16 : index
    %4 = memref.load %arg1[%c16] : memref<49xf32, #tpu.memory_space<smem>>
    %c32 = arith.constant 32 : index
    %5 = memref.load %arg1[%c32] : memref<49xf32, #tpu.memory_space<smem>>
    %6 = vector.broadcast %3 : f32 to vector<8x128xf32>
    %7 = arith.mulf %0, %6 : vector<8x128xf32>
    %8 = vector.broadcast %5 : f32 to vector<8x128xf32>
    %9 = arith.addf %7, %8 : vector<8x128xf32>
    %10 = math.sin %9 : vector<8x128xf32>
    %11 = vector.broadcast %4 : f32 to vector<8x128xf32>
    %12 = arith.mulf %11, %10 : vector<8x128xf32>
    %13 = arith.addf %2, %12 : vector<8x128xf32>
    %c1 = arith.constant 1 : index
    %14 = memref.load %arg1[%c1] : memref<49xf32, #tpu.memory_space<smem>>
    %c17 = arith.constant 17 : index
    %15 = memref.load %arg1[%c17] : memref<49xf32, #tpu.memory_space<smem>>
    %c33 = arith.constant 33 : index
    %16 = memref.load %arg1[%c33] : memref<49xf32, #tpu.memory_space<smem>>
    %17 = vector.broadcast %14 : f32 to vector<8x128xf32>
    %18 = arith.mulf %0, %17 : vector<8x128xf32>
    %19 = vector.broadcast %16 : f32 to vector<8x128xf32>
    %20 = arith.addf %18, %19 : vector<8x128xf32>
    %21 = math.sin %20 : vector<8x128xf32>
    %22 = vector.broadcast %15 : f32 to vector<8x128xf32>
    %23 = arith.mulf %22, %21 : vector<8x128xf32>
    %24 = arith.addf %13, %23 : vector<8x128xf32>
    %c2 = arith.constant 2 : index
    %25 = memref.load %arg1[%c2] : memref<49xf32, #tpu.memory_space<smem>>
    %c18 = arith.constant 18 : index
    %26 = memref.load %arg1[%c18] : memref<49xf32, #tpu.memory_space<smem>>
    %c34 = arith.constant 34 : index
    %27 = memref.load %arg1[%c34] : memref<49xf32, #tpu.memory_space<smem>>
    %28 = vector.broadcast %25 : f32 to vector<8x128xf32>
    %29 = arith.mulf %0, %28 : vector<8x128xf32>
    %30 = vector.broadcast %27 : f32 to vector<8x128xf32>
    %31 = arith.addf %29, %30 : vector<8x128xf32>
    %32 = math.sin %31 : vector<8x128xf32>
    %33 = vector.broadcast %26 : f32 to vector<8x128xf32>
    %34 = arith.mulf %33, %32 : vector<8x128xf32>
    %35 = arith.addf %24, %34 : vector<8x128xf32>
    %c3 = arith.constant 3 : index
    %36 = memref.load %arg1[%c3] : memref<49xf32, #tpu.memory_space<smem>>
    %c19 = arith.constant 19 : index
    %37 = memref.load %arg1[%c19] : memref<49xf32, #tpu.memory_space<smem>>
    %c35 = arith.constant 35 : index
    %38 = memref.load %arg1[%c35] : memref<49xf32, #tpu.memory_space<smem>>
    %39 = vector.broadcast %36 : f32 to vector<8x128xf32>
    %40 = arith.mulf %0, %39 : vector<8x128xf32>
    %41 = vector.broadcast %38 : f32 to vector<8x128xf32>
    %42 = arith.addf %40, %41 : vector<8x128xf32>
    %43 = math.sin %42 : vector<8x128xf32>
    %44 = vector.broadcast %37 : f32 to vector<8x128xf32>
    %45 = arith.mulf %44, %43 : vector<8x128xf32>
    %46 = arith.addf %35, %45 : vector<8x128xf32>
    %c4 = arith.constant 4 : index
    %47 = memref.load %arg1[%c4] : memref<49xf32, #tpu.memory_space<smem>>
    %c20 = arith.constant 20 : index
    %48 = memref.load %arg1[%c20] : memref<49xf32, #tpu.memory_space<smem>>
    %c36 = arith.constant 36 : index
    %49 = memref.load %arg1[%c36] : memref<49xf32, #tpu.memory_space<smem>>
    %50 = vector.broadcast %47 : f32 to vector<8x128xf32>
    %51 = arith.mulf %0, %50 : vector<8x128xf32>
    %52 = vector.broadcast %49 : f32 to vector<8x128xf32>
    %53 = arith.addf %51, %52 : vector<8x128xf32>
    %54 = math.sin %53 : vector<8x128xf32>
    %55 = vector.broadcast %48 : f32 to vector<8x128xf32>
    %56 = arith.mulf %55, %54 : vector<8x128xf32>
    %57 = arith.addf %46, %56 : vector<8x128xf32>
    %c5 = arith.constant 5 : index
    %58 = memref.load %arg1[%c5] : memref<49xf32, #tpu.memory_space<smem>>
    %c21 = arith.constant 21 : index
    %59 = memref.load %arg1[%c21] : memref<49xf32, #tpu.memory_space<smem>>
    %c37 = arith.constant 37 : index
    %60 = memref.load %arg1[%c37] : memref<49xf32, #tpu.memory_space<smem>>
    %61 = vector.broadcast %58 : f32 to vector<8x128xf32>
    %62 = arith.mulf %0, %61 : vector<8x128xf32>
    %63 = vector.broadcast %60 : f32 to vector<8x128xf32>
    %64 = arith.addf %62, %63 : vector<8x128xf32>
    %65 = math.sin %64 : vector<8x128xf32>
    %66 = vector.broadcast %59 : f32 to vector<8x128xf32>
    %67 = arith.mulf %66, %65 : vector<8x128xf32>
    %68 = arith.addf %57, %67 : vector<8x128xf32>
    %c6 = arith.constant 6 : index
    %69 = memref.load %arg1[%c6] : memref<49xf32, #tpu.memory_space<smem>>
    %c22 = arith.constant 22 : index
    %70 = memref.load %arg1[%c22] : memref<49xf32, #tpu.memory_space<smem>>
    %c38 = arith.constant 38 : index
    %71 = memref.load %arg1[%c38] : memref<49xf32, #tpu.memory_space<smem>>
    %72 = vector.broadcast %69 : f32 to vector<8x128xf32>
    %73 = arith.mulf %0, %72 : vector<8x128xf32>
    %74 = vector.broadcast %71 : f32 to vector<8x128xf32>
    %75 = arith.addf %73, %74 : vector<8x128xf32>
    %76 = math.sin %75 : vector<8x128xf32>
    %77 = vector.broadcast %70 : f32 to vector<8x128xf32>
    %78 = arith.mulf %77, %76 : vector<8x128xf32>
    %79 = arith.addf %68, %78 : vector<8x128xf32>
    %c7 = arith.constant 7 : index
    %80 = memref.load %arg1[%c7] : memref<49xf32, #tpu.memory_space<smem>>
    %c23 = arith.constant 23 : index
    %81 = memref.load %arg1[%c23] : memref<49xf32, #tpu.memory_space<smem>>
    %c39 = arith.constant 39 : index
    %82 = memref.load %arg1[%c39] : memref<49xf32, #tpu.memory_space<smem>>
    %83 = vector.broadcast %80 : f32 to vector<8x128xf32>
    %84 = arith.mulf %0, %83 : vector<8x128xf32>
    %85 = vector.broadcast %82 : f32 to vector<8x128xf32>
    %86 = arith.addf %84, %85 : vector<8x128xf32>
    %87 = math.sin %86 : vector<8x128xf32>
    %88 = vector.broadcast %81 : f32 to vector<8x128xf32>
    %89 = arith.mulf %88, %87 : vector<8x128xf32>
    %90 = arith.addf %79, %89 : vector<8x128xf32>
    %c8 = arith.constant 8 : index
    %91 = memref.load %arg1[%c8] : memref<49xf32, #tpu.memory_space<smem>>
    %c24 = arith.constant 24 : index
    %92 = memref.load %arg1[%c24] : memref<49xf32, #tpu.memory_space<smem>>
    %c40 = arith.constant 40 : index
    %93 = memref.load %arg1[%c40] : memref<49xf32, #tpu.memory_space<smem>>
    %94 = vector.broadcast %91 : f32 to vector<8x128xf32>
    %95 = arith.mulf %0, %94 : vector<8x128xf32>
    %96 = vector.broadcast %93 : f32 to vector<8x128xf32>
    %97 = arith.addf %95, %96 : vector<8x128xf32>
    %98 = math.sin %97 : vector<8x128xf32>
    %99 = vector.broadcast %92 : f32 to vector<8x128xf32>
    %100 = arith.mulf %99, %98 : vector<8x128xf32>
    %101 = arith.addf %90, %100 : vector<8x128xf32>
    %c9 = arith.constant 9 : index
    %102 = memref.load %arg1[%c9] : memref<49xf32, #tpu.memory_space<smem>>
    %c25 = arith.constant 25 : index
    %103 = memref.load %arg1[%c25] : memref<49xf32, #tpu.memory_space<smem>>
    %c41 = arith.constant 41 : index
    %104 = memref.load %arg1[%c41] : memref<49xf32, #tpu.memory_space<smem>>
    %105 = vector.broadcast %102 : f32 to vector<8x128xf32>
    %106 = arith.mulf %0, %105 : vector<8x128xf32>
    %107 = vector.broadcast %104 : f32 to vector<8x128xf32>
    %108 = arith.addf %106, %107 : vector<8x128xf32>
    %109 = math.sin %108 : vector<8x128xf32>
    %110 = vector.broadcast %103 : f32 to vector<8x128xf32>
    %111 = arith.mulf %110, %109 : vector<8x128xf32>
    %112 = arith.addf %101, %111 : vector<8x128xf32>
    %c10 = arith.constant 10 : index
    %113 = memref.load %arg1[%c10] : memref<49xf32, #tpu.memory_space<smem>>
    %c26 = arith.constant 26 : index
    %114 = memref.load %arg1[%c26] : memref<49xf32, #tpu.memory_space<smem>>
    %c42 = arith.constant 42 : index
    %115 = memref.load %arg1[%c42] : memref<49xf32, #tpu.memory_space<smem>>
    %116 = vector.broadcast %113 : f32 to vector<8x128xf32>
    %117 = arith.mulf %0, %116 : vector<8x128xf32>
    %118 = vector.broadcast %115 : f32 to vector<8x128xf32>
    %119 = arith.addf %117, %118 : vector<8x128xf32>
    %120 = math.sin %119 : vector<8x128xf32>
    %121 = vector.broadcast %114 : f32 to vector<8x128xf32>
    %122 = arith.mulf %121, %120 : vector<8x128xf32>
    %123 = arith.addf %112, %122 : vector<8x128xf32>
    %c11 = arith.constant 11 : index
    %124 = memref.load %arg1[%c11] : memref<49xf32, #tpu.memory_space<smem>>
    %c27 = arith.constant 27 : index
    %125 = memref.load %arg1[%c27] : memref<49xf32, #tpu.memory_space<smem>>
    %c43 = arith.constant 43 : index
    %126 = memref.load %arg1[%c43] : memref<49xf32, #tpu.memory_space<smem>>
    %127 = vector.broadcast %124 : f32 to vector<8x128xf32>
    %128 = arith.mulf %0, %127 : vector<8x128xf32>
    %129 = vector.broadcast %126 : f32 to vector<8x128xf32>
    %130 = arith.addf %128, %129 : vector<8x128xf32>
    %131 = math.sin %130 : vector<8x128xf32>
    %132 = vector.broadcast %125 : f32 to vector<8x128xf32>
    %133 = arith.mulf %132, %131 : vector<8x128xf32>
    %134 = arith.addf %123, %133 : vector<8x128xf32>
    %c12 = arith.constant 12 : index
    %135 = memref.load %arg1[%c12] : memref<49xf32, #tpu.memory_space<smem>>
    %c28 = arith.constant 28 : index
    %136 = memref.load %arg1[%c28] : memref<49xf32, #tpu.memory_space<smem>>
    %c44 = arith.constant 44 : index
    %137 = memref.load %arg1[%c44] : memref<49xf32, #tpu.memory_space<smem>>
    %138 = vector.broadcast %135 : f32 to vector<8x128xf32>
    %139 = arith.mulf %0, %138 : vector<8x128xf32>
    %140 = vector.broadcast %137 : f32 to vector<8x128xf32>
    %141 = arith.addf %139, %140 : vector<8x128xf32>
    %142 = math.sin %141 : vector<8x128xf32>
    %143 = vector.broadcast %136 : f32 to vector<8x128xf32>
    %144 = arith.mulf %143, %142 : vector<8x128xf32>
    %145 = arith.addf %134, %144 : vector<8x128xf32>
    %c13 = arith.constant 13 : index
    %146 = memref.load %arg1[%c13] : memref<49xf32, #tpu.memory_space<smem>>
    %c29 = arith.constant 29 : index
    %147 = memref.load %arg1[%c29] : memref<49xf32, #tpu.memory_space<smem>>
    %c45 = arith.constant 45 : index
    %148 = memref.load %arg1[%c45] : memref<49xf32, #tpu.memory_space<smem>>
    %149 = vector.broadcast %146 : f32 to vector<8x128xf32>
    %150 = arith.mulf %0, %149 : vector<8x128xf32>
    %151 = vector.broadcast %148 : f32 to vector<8x128xf32>
    %152 = arith.addf %150, %151 : vector<8x128xf32>
    %153 = math.sin %152 : vector<8x128xf32>
    %154 = vector.broadcast %147 : f32 to vector<8x128xf32>
    %155 = arith.mulf %154, %153 : vector<8x128xf32>
    %156 = arith.addf %145, %155 : vector<8x128xf32>
    %c14 = arith.constant 14 : index
    %157 = memref.load %arg1[%c14] : memref<49xf32, #tpu.memory_space<smem>>
    %c30 = arith.constant 30 : index
    %158 = memref.load %arg1[%c30] : memref<49xf32, #tpu.memory_space<smem>>
    %c46 = arith.constant 46 : index
    %159 = memref.load %arg1[%c46] : memref<49xf32, #tpu.memory_space<smem>>
    %160 = vector.broadcast %157 : f32 to vector<8x128xf32>
    %161 = arith.mulf %0, %160 : vector<8x128xf32>
    %162 = vector.broadcast %159 : f32 to vector<8x128xf32>
    %163 = arith.addf %161, %162 : vector<8x128xf32>
    %164 = math.sin %163 : vector<8x128xf32>
    %165 = vector.broadcast %158 : f32 to vector<8x128xf32>
    %166 = arith.mulf %165, %164 : vector<8x128xf32>
    %167 = arith.addf %156, %166 : vector<8x128xf32>
    %c15 = arith.constant 15 : index
    %168 = memref.load %arg1[%c15] : memref<49xf32, #tpu.memory_space<smem>>
    %c31 = arith.constant 31 : index
    %169 = memref.load %arg1[%c31] : memref<49xf32, #tpu.memory_space<smem>>
    %c47 = arith.constant 47 : index
    %170 = memref.load %arg1[%c47] : memref<49xf32, #tpu.memory_space<smem>>
    %171 = vector.broadcast %168 : f32 to vector<8x128xf32>
    %172 = arith.mulf %0, %171 : vector<8x128xf32>
    %173 = vector.broadcast %170 : f32 to vector<8x128xf32>
    %174 = arith.addf %172, %173 : vector<8x128xf32>
    %175 = math.sin %174 : vector<8x128xf32>
    %176 = vector.broadcast %169 : f32 to vector<8x128xf32>
    %177 = arith.mulf %176, %175 : vector<8x128xf32>
    %178 = arith.addf %167, %177 : vector<8x128xf32>
    %c0_2 = arith.constant 0 : index
    %c0_3 = arith.constant 0 : index
    %179 = vector.load %arg3[%c0_2, %c0_3] : memref<8x128xf32, #tpu.memory_space<vmem>>, vector<8x128xf32>
    tpu.vector_store %arg3[%c0_2, %c0_3], %178 {strides = array<i32>} : memref<8x128xf32, #tpu.memory_space<vmem>>, vector<8x128xf32>,
    return
  }
  func.func @transform_0(%arg0: i32) -> i32 {
    %c0_i32 = arith.constant 0 : i32
    %c0_i32_0 = arith.constant 0 : i32
    return %c0_i32 : i32
  }
  func.func @transform_1(%arg0: i32) -> (i32, i32) {
    %c0_i32 = arith.constant 0 : i32
    %c0_i32_0 = arith.constant 0 : i32
    return %arg0, %c0_i32 : i32, i32
  }
  func.func @transform_2(%arg0: i32) -> (i32, i32) {
    %c0_i32 = arith.constant 0 : i32
    %c0_i32_0 = arith.constant 0 : i32
    return %arg0, %c0_i32 : i32, i32
  }
}

</mosaic_0001>

<llo_original>
// kernel: tpu_custom_call.1
$region0: #{tpu_custom_call.1}
  #allocation0 [shape = 'u32[]', space=smem, size = 0x4, offset = 0x4, fixed_abs, tag = 'smem constant byte address 0x4 - core index']
  #allocation1 [shape = 'u32[144,128]{1,0:T(1,128)}', space=vmem, size = 0x12000, scoped, tag = 'internal scratch']
  %s0 = inlined_call_operand.hbm [shape: f32[49], index: 0, kind: input, shape index: {}]
  %s1 = inlined_call_operand.hbm [shape: f32[8,128], index: 1, kind: input, shape index: {}]
  %s2 = inlined_call_operand.hbm [shape: f32[8,128], index: 2, kind: output, shape index: {}]
  %s3 = sld [smem:[#allocation0]]
  $region26: #{tpu_custom_call.1} parent=0
    _
  %s5 = ssub.s32 1, %s3
  %s6 = scalar_select 0, %s5, %s3
  $region1: #{tpu_custom_call.1} parent=0
    #allocation2 [shape = 'u8[512]{0}', space=smem, size = 0x200, scoped, tag = 'input window, operand 0, single buffered']
    #allocation3 [shape = 's32[1]{0}', space=sflag, size = 0x4, scoped, tag = 'scoped memory for tpu_custom_call.1']
    #allocation4 [shape = 's32[1]{0}', space=sflag, size = 0x4, scoped, tag = 'scoped memory for tpu_custom_call.1']
    #allocation5 [shape = 's32[1]{0}', space=sflag, size = 0x4, scoped, tag = 'scoped memory for tpu_custom_call.1']
    #allocation6 [shape = 'u8[4096]{0}', space=vmem, size = 0x1000, scoped, tag = 'input window, operand 1, single buffered']
    #allocation7 [shape = 'u8[4096]{0}', space=vmem, size = 0x1000, scoped, tag = 'output window, operand 0, single buffered']
    %7 = vsyncpa [#allocation5], 0
    %8 = vsyncpa [#allocation3], 0
    %9 = vsyncpa [#allocation4], 0
    // Predicated region
    $region2: #{tpu_custom_call.1} parent=1 // pred_check
      _
    $region3: #{tpu_custom_call.1} parent=1 // pred_check_branch
      %11 = sbr.rel (0) target = $region5
    $region4: #{tpu_custom_call.1} parent=1 // pred_region
      %s13 = ssub.s32 16, 16
      %14 = vsyncadd [#allocation5], %s13
      %17 = dma.hbm_to_smem %s0, 16, [#allocation2], [#allocation5]
    $region5: #{tpu_custom_call.1} parent=1 // pred_fallthru
      _
    // Predicated region
    $region6: #{tpu_custom_call.1} parent=1 // pred_check
      _
    $region7: #{tpu_custom_call.1} parent=1 // pred_check_branch
      %19 = sbr.rel (0) target = $region9
    $region8: #{tpu_custom_call.1} parent=1 // pred_region
      %s21 = ssub.s32 128, 128
      %22 = vsyncadd [#allocation3], %s21
      %s24 = sshll.u32 [#allocation6], 4
      %s25 = int_to_ptr.vmem [resolvable:$true] %s24
      %27 = dma.hbm_to_vmem [thread:$0]  %s1, 128, %s25, [#allocation3]
    $region9: #{tpu_custom_call.1} parent=1 // pred_fallthru
      _
    // Predicated region
    $region10: #{tpu_custom_call.1} parent=1 // pred_check
      _
    $region11: #{tpu_custom_call.1} parent=1 // pred_check_branch
      %29 = sbr.rel (0) target = $region13
    $region12: #{tpu_custom_call.1} parent=1 // pred_region
      %30 = dma.done [#allocation5], 16
    $region13: #{tpu_custom_call.1} parent=1 // pred_fallthru
      _
    // Predicated region
    $region14: #{tpu_custom_call.1} parent=1 // pred_check
      _
    $region15: #{tpu_custom_call.1} parent=1 // pred_check_branch
      %32 = sbr.rel (0) target = $region17
    $region16: #{tpu_custom_call.1} parent=1 // pred_region
      %33 = dma.done [#allocation3], 128
    $region17: #{tpu_custom_call.1} parent=1 // pred_fallthru
      _
    %34 = sfence
    %v35 = vld [vmem:[#allocation6] sm:$0xff]
    %s36 = sld [smem:[#allocation2 + $0x30]]
    %v37 = vstv %s36
    %s38 = sld [smem:[#allocation2]]
    %s39 = sld [smem:[#allocation2 + $0x10]]
    %s40 = sld [smem:[#allocation2 + $0x20]]
    %v41 = vstv %s38
    %v42 = vmul.f32 %v35, %v41
    %v43 = vstv %s40
    %v44 = vadd.f32 %v42, %v43
    %v45 = vand.u32 2147483647, %v44
    %vm46 = vcmp.le.f32.partialorder %v45, 0.7853982
    %vm47 = vcmp.lt.s32.totalorder %v44, 0
    %v48 = vand.u32 %v44, 2139095040
    %v49 = vshrl.u32 %v48, 23
    %v50 = vsub.s32 %v49, 127
    %v51 = vand.u32 2147483647, %v44
    %v52 = vand.u32 %v51, 8388607
    %v53 = vor.u32 %v52, 8388608
    %v54 = vsub.s32 0, %v53
    %v55 = vadd.s32 %v50, 1
    %vm56 = vcmp.gt.s32.totalorder %v55, 0
    %v57 = vsel %vm56, %v55, 0
    %v58 = vshrl.u32 %v57, 5
    %v59 = vand.u32 %v57, 31
    %v60 = vsub.s32 32, %v59
    %v61 = vshrl.u32 683565275, %v60
    %v62 = vshll.u32 683565275, %v59
    %v63 = vshrl.u32 2475754826, %v60
    %v64 = vor.u32 %v62, %v63
    %v65 = vshll.u32 2475754826, %v59
    %v66 = vshrl.u32 2131351028, %v60
    %v67 = vor.u32 %v65, %v66
    %v68 = vshll.u32 2131351028, %v59
    %v69 = vshrl.u32 2102212464, %v60
    %v70 = vor.u32 %v68, %v69
    %v71 = vshll.u32 2102212464, %v59
    %v72 = vshrl.u32 920167782, %v60
    %v73 = vor.u32 %v71, %v72
    %v74 = vshll.u32 920167782, %v59
    %v75 = vshrl.u32 1326507024, %v60
    %v76 = vor.u32 %v74, %v75
    %vm77 = vcmp.lt.s32.totalorder %v58, 1
    %vm78 = vcmp.lt.s32.totalorder %v58, 2
    %vm79 = vcmp.lt.s32.totalorder %v58, 3
    %vm80 = vcmp.lt.s32.totalorder %v58, 4
    %v81 = vsel %vm77, %v61, %v64
    %v82 = vsel %vm80, %v70, 2102212464
    %v83 = vsel %vm79, %v67, %v82
    %v84 = vsel %vm78, %v81, %v83
    %v85 = vsel %vm77, %v64, %v67
    %v86 = vsel %vm80, %v73, 920167782
    %v87 = vsel %vm79, %v70, %v86
    %v88 = vsel %vm78, %v85, %v87
    %v89 = vsel %vm77, %v67, %v70
    %v90 = vsel %vm80, %v76, 1326507024
    %v91 = vsel %vm79, %v73, %v90
    %v92 = vsel %vm78, %v89, %v91
    %v93 = vshll.u32 %v53, 8
    %v94 = vmul.u32.u64.compose %v93, %v92
    %v95 = vextract.low.u32 %v94
    %v96 = vextract.high.u32 %v94
    %v97 = vmul.u32.u64.compose %v93, %v88
    %v98 = vextract.low.u32 %v97
    %v99 = vextract.high.u32 %v97
    %v100 = vmul.u32 %v93, %v84
    %v101 = vadd.s32 %v96, %v98
    %vm102 = vc.u32 %v96, %v98
    %v103 = vadd.s32 %v99, 1
    %v104 = vsel %vm102, %v103, %v99
    %v105 = vadd.s32 %v100, %v104
    %v106 = vadd.s32 %v105, 536870912
    %v107 = vshrl.u32 %v106, 30
    %v108 = vshll.u32 %v107, 30
    %v109 = vsub.s32 %v105, %v108
    %vm110 = vcmp.lt.s32.totalorder %v109, 0
    %v111 = vsub.s32 0, %v109
    %v112 = vsel %vm110, %v111, %v109
    %v113 = vclz %v112
    %v114 = vsub.s32 %v113, 2
    %vm115 = vcmp.gt.s32.totalorder 0, %v114
    %v116 = vsel %vm115, 0, %v114
    %v117 = vsub.s32 32, %v116
    %v118 = vshll.u32 %v109, %v116
    %v119 = vshrl.u32 %v101, %v117
    %v120 = vor.u32 %v118, %v119
    %v121 = vsub.s32 4294967266, %v116
    %v122 = vadd.s32 %v121, 127
    %v123 = vshll.u32 %v122, 23
    %v124 = vor.u32 4788187, %v123
    %v125 = vand.u32 2147483647, %v124
    %v127 = vcvt.s32.f32 %v120
    %v128 = vmul.f32 %v127, %v125
    %v129 = vxor.u32 %v128, 2147483648
    %v130 = vsel %vm47, %v129, %v128
    %v131 = vsub.s32 4, %v107
    %v132 = vsel %vm47, %v131, %v107
    %v133 = vsel %vm46, %v44, %v130
    %v134 = vsel %vm46, 0, %v132
    %v135 = vcosq.f32.pop %v133
    %v136 = vsinq.f32.pop %v133
    %vm137 = vweird.f32 %v44
    %v138 = vadd.s32 %v134, 3
    %v139 = vand.u32 %v138, 3
    %vm140 = vcmp.lt.s32.totalorder %v139, 2
    %vm141 = vcmp.eq.s32.totalorder %v139, 0
    %v142 = vxor.u32 %v136, 2147483648
    %v143 = vsel %vm141, %v135, %v142
    %vm144 = vcmp.eq.s32.totalorder %v139, 2
    %v145 = vxor.u32 %v135, 2147483648
    %v146 = vsel %vm144, %v145, %v136
    %v147 = vsel %vm140, %v143, %v146
    %v148 = vsel %vm137, nan, %v147
    %v149 = vstv %s39
    %v150 = vmul.f32 %v149, %v148
    %v151 = vadd.f32 %v37, %v150
    %s152 = sld [smem:[#allocation2 + $0x1]]
    %s153 = sld [smem:[#allocation2 + $0x11]]
    %s154 = sld [smem:[#allocation2 + $0x21]]
    %v155 = vstv %s152
    %v156 = vmul.f32 %v35, %v155
    %v157 = vstv %s154
    %v158 = vadd.f32 %v156, %v157
    %v159 = vand.u32 2147483647, %v158
    %vm160 = vcmp.le.f32.partialorder %v159, 0.7853982
    %vm161 = vcmp.lt.s32.totalorder %v158, 0
    %v162 = vand.u32 %v158, 2139095040
    %v163 = vshrl.u32 %v162, 23
    %v164 = vsub.s32 %v163, 127
    %v165 = vand.u32 2147483647, %v158
    %v166 = vand.u32 %v165, 8388607
    %v167 = vor.u32 %v166, 8388608
    %v168 = vsub.s32 0, %v167
    %v169 = vadd.s32 %v164, 1
    %vm170 = vcmp.gt.s32.totalorder %v169, 0
    %v171 = vsel %vm170, %v169, 0
    %v172 = vshrl.u32 %v171, 5
    %v173 = vand.u32 %v171, 31
    %v174 = vsub.s32 32, %v173
    %v175 = vshrl.u32 683565275, %v174
    %v176 = vshll.u32 683565275, %v173
    %v177 = vshrl.u32 2475754826, %v174
    %v178 = vor.u32 %v176, %v177
    %v179 = vshll.u32 2475754826, %v173
    %v180 = vshrl.u32 2131351028, %v174
    %v181 = vor.u32 %v179, %v180
    %v182 = vshll.u32 2131351028, %v173
    %v183 = vshrl.u32 2102212464, %v174
    %v184 = vor.u32 %v182, %v183
    %v185 = vshll.u32 2102212464, %v173
    %v186 = vshrl.u32 920167782, %v174
    %v187 = vor.u32 %v185, %v186
    %v188 = vshll.u32 920167782, %v173
    %v189 = vshrl.u32 1326507024, %v174
    %v190 = vor.u32 %v188, %v189
    %vm191 = vcmp.lt.s32.totalorder %v172, 1
    %vm192 = vcmp.lt.s32.totalorder %v172, 2
    %vm193 = vcmp.lt.s32.totalorder %v172, 3
    %vm194 = vcmp.lt.s32.totalorder %v172, 4
    %v195 = vsel %vm191, %v175, %v178
    %v196 = vsel %vm194, %v184, 2102212464
    %v197 = vsel %vm193, %v181, %v196
    %v198 = vsel %vm192, %v195, %v197
    %v199 = vsel %vm191, %v178, %v181
    %v200 = vsel %vm194, %v187, 920167782
    %v201 = vsel %vm193, %v184, %v200
    %v202 = vsel %vm192, %v199, %v201
    %v203 = vsel %vm191, %v181, %v184
    %v204 = vsel %vm194, %v190, 1326507024
    %v205 = vsel %vm193, %v187, %v204
    %v206 = vsel %vm192, %v203, %v205
    %v207 = vshll.u32 %v167, 8
    %v208 = vmul.u32.u64.compose %v207, %v206
    %v209 = vextract.low.u32 %v208
    %v210 = vextract.high.u32 %v208
    %v211 = vmul.u32.u64.compose %v207, %v202
    %v212 = vextract.low.u32 %v211
    %v213 = vextract.high.u32 %v211
    %v214 = vmul.u32 %v207, %v198
    %v215 = vadd.s32 %v210, %v212
    %vm216 = vc.u32 %v210, %v212
    %v217 = vadd.s32 %v213, 1
    %v218 = vsel %vm216, %v217, %v213
    %v219 = vadd.s32 %v214, %v218
    %v220 = vadd.s32 %v219, 536870912
    %v221 = vshrl.u32 %v220, 30
    %v222 = vshll.u32 %v221, 30
    %v223 = vsub.s32 %v219, %v222
    %vm224 = vcmp.lt.s32.totalorder %v223, 0
    %v225 = vsub.s32 0, %v223
    %v226 = vsel %vm224, %v225, %v223
    %v227 = vclz %v226
    %v228 = vsub.s32 %v227, 2
    %vm229 = vcmp.gt.s32.totalorder 0, %v228
    %v230 = vsel %vm229, 0, %v228
    %v231 = vsub.s32 32, %v230
    %v232 = vshll.u32 %v223, %v230
    %v233 = vshrl.u32 %v215, %v231
    %v234 = vor.u32 %v232, %v233
    %v235 = vsub.s32 4294967266, %v230
    %v236 = vadd.s32 %v235, 127
    %v237 = vshll.u32 %v236, 23
    %v238 = vor.u32 4788187, %v237
    %v239 = vand.u32 2147483647, %v238
    %v241 = vcvt.s32.f32 %v234
    %v242 = vmul.f32 %v241, %v239
    %v243 = vxor.u32 %v242, 2147483648
    %v244 = vsel %vm161, %v243, %v242
    %v245 = vsub.s32 4, %v221
    %v246 = vsel %vm161, %v245, %v221
    %v247 = vsel %vm160, %v158, %v244
    %v248 = vsel %vm160, 0, %v246
    %v249 = vcosq.f32.pop %v247
    %v250 = vsinq.f32.pop %v247
    %vm251 = vweird.f32 %v158
    %v252 = vadd.s32 %v248, 3
    %v253 = vand.u32 %v252, 3
    %vm254 = vcmp.lt.s32.totalorder %v253, 2
    %vm255 = vcmp.eq.s32.totalorder %v253, 0
    %v256 = vxor.u32 %v250, 2147483648
    %v257 = vsel %vm255, %v249, %v256
    %vm258 = vcmp.eq.s32.totalorder %v253, 2
    %v259 = vxor.u32 %v249, 2147483648
    %v260 = vsel %vm258, %v259, %v250
    %v261 = vsel %vm254, %v257, %v260
    %v262 = vsel %vm251, nan, %v261
    %v263 = vstv %s153
    %v264 = vmul.f32 %v263, %v262
    %v265 = vadd.f32 %v151, %v264
    %s266 = sld [smem:[#allocation2 + $0x2]]
    %s267 = sld [smem:[#allocation2 + $0x12]]
    %s268 = sld [smem:[#allocation2 + $0x22]]
    %v269 = vstv %s266
    %v270 = vmul.f32 %v35, %v269
    %v271 = vstv %s268
    %v272 = vadd.f32 %v270, %v271
    %v273 = vand.u32 2147483647, %v272
    %vm274 = vcmp.le.f32.partialorder %v273, 0.7853982
    %vm275 = vcmp.lt.s32.totalorder %v272, 0
    %v276 = vand.u32 %v272, 2139095040
    %v277 = vshrl.u32 %v276, 23
    %v278 = vsub.s32 %v277, 127
    %v279 = vand.u32 2147483647, %v272
    %v280 = vand.u32 %v279, 8388607
    %v281 = vor.u32 %v280, 8388608
    %v282 = vsub.s32 0, %v281
    %v283 = vadd.s32 %v278, 1
    %vm284 = vcmp.gt.s32.totalorder %v283, 0
    %v285 = vsel %vm284, %v283, 0
    %v286 = vshrl.u32 %v285, 5
    %v287 = vand.u32 %v285, 31
    %v288 = vsub.s32 32, %v287
    %v289 = vshrl.u32 683565275, %v288
    %v290 = vshll.u32 683565275, %v287
    %v291 = vshrl.u32 2475754826, %v288
    %v292 = vor.u32 %v290, %v291
    %v293 = vshll.u32 2475754826, %v287
    %v294 = vshrl.u32 2131351028, %v288
    %v295 = vor.u32 %v293, %v294
    %v296 = vshll.u32 2131351028, %v287
    %v297 = vshrl.u32 2102212464, %v288
    %v298 = vor.u32 %v296, %v297
    %v299 = vshll.u32 2102212464, %v287
    %v300 = vshrl.u32 920167782, %v288
    %v301 = vor.u32 %v299, %v300
    %v302 = vshll.u32 920167782, %v287
    %v303 = vshrl.u32 1326507024, %v288
    %v304 = vor.u32 %v302, %v303
    %vm305 = vcmp.lt.s32.totalorder %v286, 1
    %vm306 = vcmp.lt.s32.totalorder %v286, 2
    %vm307 = vcmp.lt.s32.totalorder %v286, 3
    %vm308 = vcmp.lt.s32.totalorder %v286, 4
    %v309 = vsel %vm305, %v289, %v292
    %v310 = vsel %vm308, %v298, 2102212464
    %v311 = vsel %vm307, %v295, %v310
    %v312 = vsel %vm306, %v309, %v311
    %v313 = vsel %vm305, %v292, %v295
    %v314 = vsel %vm308, %v301, 920167782
    %v315 = vsel %vm307, %v298, %v314
    %v316 = vsel %vm306, %v313, %v315
    %v317 = vsel %vm305, %v295, %v298
    %v318 = vsel %vm308, %v304, 1326507024
    %v319 = vsel %vm307, %v301, %v318
    %v320 = vsel %vm306, %v317, %v319
    %v321 = vshll.u32 %v281, 8
    %v322 = vmul.u32.u64.compose %v321, %v320
    %v323 = vextract.low.u32 %v322
    %v324 = vextract.high.u32 %v322
    %v325 = vmul.u32.u64.compose %v321, %v316
    %v326 = vextract.low.u32 %v325
    %v327 = vextract.high.u32 %v325
    %v328 = vmul.u32 %v321, %v312
    %v329 = vadd.s32 %v324, %v326
    %vm330 = vc.u32 %v324, %v326
    %v331 = vadd.s32 %v327, 1
    %v332 = vsel %vm330, %v331, %v327
    %v333 = vadd.s32 %v328, %v332
    %v334 = vadd.s32 %v333, 536870912
    %v335 = vshrl.u32 %v334, 30
    %v336 = vshll.u32 %v335, 30
    %v337 = vsub.s32 %v333, %v336
    %vm338 = vcmp.lt.s32.totalorder %v337, 0
    %v339 = vsub.s32 0, %v337
    %v340 = vsel %vm338, %v339, %v337
    %v341 = vclz %v340
    %v342 = vsub.s32 %v341, 2
    %vm343 = vcmp.gt.s32.totalorder 0, %v342
    %v344 = vsel %vm343, 0, %v342
    %v345 = vsub.s32 32, %v344
    %v346 = vshll.u32 %v337, %v344
    %v347 = vshrl.u32 %v329, %v345
    %v348 = vor.u32 %v346, %v347
    %v349 = vsub.s32 4294967266, %v344
    %v350 = vadd.s32 %v349, 127
    %v351 = vshll.u32 %v350, 23
    %v352 = vor.u32 4788187, %v351
    %v353 = vand.u32 2147483647, %v352
    %v355 = vcvt.s32.f32 %v348
    %v356 = vmul.f32 %v355, %v353
    %v357 = vxor.u32 %v356, 2147483648
    %v358 = vsel %vm275, %v357, %v356
    %v359 = vsub.s32 4, %v335
    %v360 = vsel %vm275, %v359, %v335
    %v361 = vsel %vm274, %v272, %v358
    %v362 = vsel %vm274, 0, %v360
    %v363 = vcosq.f32.pop %v361
    %v364 = vsinq.f32.pop %v361
    %vm365 = vweird.f32 %v272
    %v366 = vadd.s32 %v362, 3
    %v367 = vand.u32 %v366, 3
    %vm368 = vcmp.lt.s32.totalorder %v367, 2
    %vm369 = vcmp.eq.s32.totalorder %v367, 0
    %v370 = vxor.u32 %v364, 2147483648
    %v371 = vsel %vm369, %v363, %v370
    %vm372 = vcmp.eq.s32.totalorder %v367, 2
    %v373 = vxor.u32 %v363, 2147483648
    %v374 = vsel %vm372, %v373, %v364
    %v375 = vsel %vm368, %v371, %v374
    %v376 = vsel %vm365, nan, %v375
    %v377 = vstv %s267
    %v378 = vmul.f32 %v377, %v376
    %v379 = vadd.f32 %v265, %v378
    %s380 = sld [smem:[#allocation2 + $0x3]]
    %s381 = sld [smem:[#allocation2 + $0x13]]
    %s382 = sld [smem:[#allocation2 + $0x23]]
    %v383 = vstv %s380
    %v384 = vmul.f32 %v35, %v383
    %v385 = vstv %s382
    %v386 = vadd.f32 %v384, %v385
    %v387 = vand.u32 2147483647, %v386
    %vm388 = vcmp.le.f32.partialorder %v387, 0.7853982
    %vm389 = vcmp.lt.s32.totalorder %v386, 0
    %v390 = vand.u32 %v386, 2139095040
    %v391 = vshrl.u32 %v390, 23
    %v392 = vsub.s32 %v391, 127
    %v393 = vand.u32 2147483647, %v386
    %v394 = vand.u32 %v393, 8388607
    %v395 = vor.u32 %v394, 8388608
    %v396 = vsub.s32 0, %v395
    %v397 = vadd.s32 %v392, 1
    %vm398 = vcmp.gt.s32.totalorder %v397, 0
    %v399 = vsel %vm398, %v397, 0
    %v400 = vshrl.u32 %v399, 5
    %v401 = vand.u32 %v399, 31
    %v402 = vsub.s32 32, %v401
    %v403 = vshrl.u32 683565275, %v402
    %v404 = vshll.u32 683565275, %v401
    %v405 = vshrl.u32 2475754826, %v402
    %v406 = vor.u32 %v404, %v405
    %v407 = vshll.u32 2475754826, %v401
    %v408 = vshrl.u32 2131351028, %v402
    %v409 = vor.u32 %v407, %v408
    %v410 = vshll.u32 2131351028, %v401
    %v411 = vshrl.u32 2102212464, %v402
    %v412 = vor.u32 %v410, %v411
    %v413 = vshll.u32 2102212464, %v401
    %v414 = vshrl.u32 920167782, %v402
    %v415 = vor.u32 %v413, %v414
    %v416 = vshll.u32 920167782, %v401
    %v417 = vshrl.u32 1326507024, %v402
    %v418 = vor.u32 %v416, %v417
    %vm419 = vcmp.lt.s32.totalorder %v400, 1
    %vm420 = vcmp.lt.s32.totalorder %v400, 2
    %vm421 = vcmp.lt.s32.totalorder %v400, 3
    %vm422 = vcmp.lt.s32.totalorder %v400, 4
    %v423 = vsel %vm419, %v403, %v406
    %v424 = vsel %vm422, %v412, 2102212464
    %v425 = vsel %vm421, %v409, %v424
    %v426 = vsel %vm420, %v423, %v425
    %v427 = vsel %vm419, %v406, %v409
    %v428 = vsel %vm422, %v415, 920167782
    %v429 = vsel %vm421, %v412, %v428
    %v430 = vsel %vm420, %v427, %v429
    %v431 = vsel %vm419, %v409, %v412
    %v432 = vsel %vm422, %v418, 1326507024
    %v433 = vsel %vm421, %v415, %v432
    %v434 = vsel %vm420, %v431, %v433
    %v435 = vshll.u32 %v395, 8
    %v436 = vmul.u32.u64.compose %v435, %v434
    %v437 = vextract.low.u32 %v436
    %v438 = vextract.high.u32 %v436
    %v439 = vmul.u32.u64.compose %v435, %v430
    %v440 = vextract.low.u32 %v439
    %v441 = vextract.high.u32 %v439
    %v442 = vmul.u32 %v435, %v426
    %v443 = vadd.s32 %v438, %v440
    %vm444 = vc.u32 %v438, %v440
    %v445 = vadd.s32 %v441, 1
    %v446 = vsel %vm444, %v445, %v441
    %v447 = vadd.s32 %v442, %v446
    %v448 = vadd.s32 %v447, 536870912
    %v449 = vshrl.u32 %v448, 30
    %v450 = vshll.u32 %v449, 30
    %v451 = vsub.s32 %v447, %v450
    %vm452 = vcmp.lt.s32.totalorder %v451, 0
    %v453 = vsub.s32 0, %v451
    %v454 = vsel %vm452, %v453, %v451
    %v455 = vclz %v454
    %v456 = vsub.s32 %v455, 2
    %vm457 = vcmp.gt.s32.totalorder 0, %v456
    %v458 = vsel %vm457, 0, %v456
    %v459 = vsub.s32 32, %v458
    %v460 = vshll.u32 %v451, %v458
    %v461 = vshrl.u32 %v443, %v459
    %v462 = vor.u32 %v460, %v461
    %v463 = vsub.s32 4294967266, %v458
    %v464 = vadd.s32 %v463, 127
    %v465 = vshll.u32 %v464, 23
    %v466 = vor.u32 4788187, %v465
    %v467 = vand.u32 2147483647, %v466
    %v469 = vcvt.s32.f32 %v462
    %v470 = vmul.f32 %v469, %v467
    %v471 = vxor.u32 %v470, 2147483648
    %v472 = vsel %vm389, %v471, %v470
    %v473 = vsub.s32 4, %v449
    %v474 = vsel %vm389, %v473, %v449
    %v475 = vsel %vm388, %v386, %v472
    %v476 = vsel %vm388, 0, %v474
    %v477 = vcosq.f32.pop %v475
    %v478 = vsinq.f32.pop %v475
    %vm479 = vweird.f32 %v386
    %v480 = vadd.s32 %v476, 3
    %v481 = vand.u32 %v480, 3
    %vm482 = vcmp.lt.s32.totalorder %v481, 2
    %vm483 = vcmp.eq.s32.totalorder %v481, 0
    %v484 = vxor.u32 %v478, 2147483648
    %v485 = vsel %vm483, %v477, %v484
    %vm486 = vcmp.eq.s32.totalorder %v481, 2
    %v487 = vxor.u32 %v477, 2147483648
    %v488 = vsel %vm486, %v487, %v478
    %v489 = vsel %vm482, %v485, %v488
    %v490 = vsel %vm479, nan, %v489
    %v491 = vstv %s381
    %v492 = vmul.f32 %v491, %v490
    %v493 = vadd.f32 %v379, %v492
    %s494 = sld [smem:[#allocation2 + $0x4]]
    %s495 = sld [smem:[#allocation2 + $0x14]]
    %s496 = sld [smem:[#allocation2 + $0x24]]
    %v497 = vstv %s494
    %v498 = vmul.f32 %v35, %v497
    %v499 = vstv %s496
    %v500 = vadd.f32 %v498, %v499
    %v501 = vand.u32 2147483647, %v500
    %vm502 = vcmp.le.f32.partialorder %v501, 0.7853982
    %vm503 = vcmp.lt.s32.totalorder %v500, 0
    %v504 = vand.u32 %v500, 2139095040
    %v505 = vshrl.u32 %v504, 23
    %v506 = vsub.s32 %v505, 127
    %v507 = vand.u32 2147483647, %v500
    %v508 = vand.u32 %v507, 8388607
    %v509 = vor.u32 %v508, 8388608
    %v510 = vsub.s32 0, %v509
    %v511 = vadd.s32 %v506, 1
    %vm512 = vcmp.gt.s32.totalorder %v511, 0
    %v513 = vsel %vm512, %v511, 0
    %v514 = vshrl.u32 %v513, 5
    %v515 = vand.u32 %v513, 31
    %v516 = vsub.s32 32, %v515
    %v517 = vshrl.u32 683565275, %v516
    %v518 = vshll.u32 683565275, %v515
    %v519 = vshrl.u32 2475754826, %v516
    %v520 = vor.u32 %v518, %v519
    %v521 = vshll.u32 2475754826, %v515
    %v522 = vshrl.u32 2131351028, %v516
    %v523 = vor.u32 %v521, %v522
    %v524 = vshll.u32 2131351028, %v515
    %v525 = vshrl.u32 2102212464, %v516
    %v526 = vor.u32 %v524, %v525
    %v527 = vshll.u32 2102212464, %v515
    %v528 = vshrl.u32 920167782, %v516
    %v529 = vor.u32 %v527, %v528
    %v530 = vshll.u32 920167782, %v515
    %v531 = vshrl.u32 1326507024, %v516
    %v532 = vor.u32 %v530, %v531
    %vm533 = vcmp.lt.s32.totalorder %v514, 1
    %vm534 = vcmp.lt.s32.totalorder %v514, 2
    %vm535 = vcmp.lt.s32.totalorder %v514, 3
    %vm536 = vcmp.lt.s32.totalorder %v514, 4
    %v537 = vsel %vm533, %v517, %v520
    %v538 = vsel %vm536, %v526, 2102212464
    %v539 = vsel %vm535, %v523, %v538
    %v540 = vsel %vm534, %v537, %v539
    %v541 = vsel %vm533, %v520, %v523
    %v542 = vsel %vm536, %v529, 920167782
    %v543 = vsel %vm535, %v526, %v542
    %v544 = vsel %vm534, %v541, %v543
    %v545 = vsel %vm533, %v523, %v526
    %v546 = vsel %vm536, %v532, 1326507024
    %v547 = vsel %vm535, %v529, %v546
    %v548 = vsel %vm534, %v545, %v547
    %v549 = vshll.u32 %v509, 8
    %v550 = vmul.u32.u64.compose %v549, %v548
    %v551 = vextract.low.u32 %v550
    %v552 = vextract.high.u32 %v550
    %v553 = vmul.u32.u64.compose %v549, %v544
    %v554 = vextract.low.u32 %v553
    %v555 = vextract.high.u32 %v553
    %v556 = vmul.u32 %v549, %v540
    %v557 = vadd.s32 %v552, %v554
    %vm558 = vc.u32 %v552, %v554
    %v559 = vadd.s32 %v555, 1
    %v560 = vsel %vm558, %v559, %v555
    %v561 = vadd.s32 %v556, %v560
    %v562 = vadd.s32 %v561, 536870912
    %v563 = vshrl.u32 %v562, 30
    %v564 = vshll.u32 %v563, 30
    %v565 = vsub.s32 %v561, %v564
    %vm566 = vcmp.lt.s32.totalorder %v565, 0
    %v567 = vsub.s32 0, %v565
    %v568 = vsel %vm566, %v567, %v565
    %v569 = vclz %v568
    %v570 = vsub.s32 %v569, 2
    %vm571 = vcmp.gt.s32.totalorder 0, %v570
    %v572 = vsel %vm571, 0, %v570
    %v573 = vsub.s32 32, %v572
    %v574 = vshll.u32 %v565, %v572
    %v575 = vshrl.u32 %v557, %v573
    %v576 = vor.u32 %v574, %v575
    %v577 = vsub.s32 4294967266, %v572
    %v578 = vadd.s32 %v577, 127
    %v579 = vshll.u32 %v578, 23
    %v580 = vor.u32 4788187, %v579
    %v581 = vand.u32 2147483647, %v580
    %v583 = vcvt.s32.f32 %v576
    %v584 = vmul.f32 %v583, %v581
    %v585 = vxor.u32 %v584, 2147483648
    %v586 = vsel %vm503, %v585, %v584
    %v587 = vsub.s32 4, %v563
    %v588 = vsel %vm503, %v587, %v563
    %v589 = vsel %vm502, %v500, %v586
    %v590 = vsel %vm502, 0, %v588
    %v591 = vcosq.f32.pop %v589
    %v592 = vsinq.f32.pop %v589
    %vm593 = vweird.f32 %v500
    %v594 = vadd.s32 %v590, 3
    %v595 = vand.u32 %v594, 3
    %vm596 = vcmp.lt.s32.totalorder %v595, 2
    %vm597 = vcmp.eq.s32.totalorder %v595, 0
    %v598 = vxor.u32 %v592, 2147483648
    %v599 = vsel %vm597, %v591, %v598
    %vm600 = vcmp.eq.s32.totalorder %v595, 2
    %v601 = vxor.u32 %v591, 2147483648
    %v602 = vsel %vm600, %v601, %v592
    %v603 = vsel %vm596, %v599, %v602
    %v604 = vsel %vm593, nan, %v603
    %v605 = vstv %s495
    %v606 = vmul.f32 %v605, %v604
    %v607 = vadd.f32 %v493, %v606
    %s608 = sld [smem:[#allocation2 + $0x5]]
    %s609 = sld [smem:[#allocation2 + $0x15]]
    %s610 = sld [smem:[#allocation2 + $0x25]]
    %v611 = vstv %s608
    %v612 = vmul.f32 %v35, %v611
    %v613 = vstv %s610
    %v614 = vadd.f32 %v612, %v613
    %v615 = vand.u32 2147483647, %v614
    %vm616 = vcmp.le.f32.partialorder %v615, 0.7853982
    %vm617 = vcmp.lt.s32.totalorder %v614, 0
    %v618 = vand.u32 %v614, 2139095040
    %v619 = vshrl.u32 %v618, 23
    %v620 = vsub.s32 %v619, 127
    %v621 = vand.u32 2147483647, %v614
    %v622 = vand.u32 %v621, 8388607
    %v623 = vor.u32 %v622, 8388608
    %v624 = vsub.s32 0, %v623
    %v625 = vadd.s32 %v620, 1
    %vm626 = vcmp.gt.s32.totalorder %v625, 0
    %v627 = vsel %vm626, %v625, 0
    %v628 = vshrl.u32 %v627, 5
    %v629 = vand.u32 %v627, 31
    %v630 = vsub.s32 32, %v629
    %v631 = vshrl.u32 683565275, %v630
    %v632 = vshll.u32 683565275, %v629
    %v633 = vshrl.u32 2475754826, %v630
    %v634 = vor.u32 %v632, %v633
    %v635 = vshll.u32 2475754826, %v629
    %v636 = vshrl.u32 2131351028, %v630
    %v637 = vor.u32 %v635, %v636
    %v638 = vshll.u32 2131351028, %v629
    %v639 = vshrl.u32 2102212464, %v630
    %v640 = vor.u32 %v638, %v639
    %v641 = vshll.u32 2102212464, %v629
    %v642 = vshrl.u32 920167782, %v630
    %v643 = vor.u32 %v641, %v642
    %v644 = vshll.u32 920167782, %v629
    %v645 = vshrl.u32 1326507024, %v630
    %v646 = vor.u32 %v644, %v645
    %vm647 = vcmp.lt.s32.totalorder %v628, 1
    %vm648 = vcmp.lt.s32.totalorder %v628, 2
    %vm649 = vcmp.lt.s32.totalorder %v628, 3
    %vm650 = vcmp.lt.s32.totalorder %v628, 4
    %v651 = vsel %vm647, %v631, %v634
    %v652 = vsel %vm650, %v640, 2102212464
    %v653 = vsel %vm649, %v637, %v652
    %v654 = vsel %vm648, %v651, %v653
    %v655 = vsel %vm647, %v634, %v637
    %v656 = vsel %vm650, %v643, 920167782
    %v657 = vsel %vm649, %v640, %v656
    %v658 = vsel %vm648, %v655, %v657
    %v659 = vsel %vm647, %v637, %v640
    %v660 = vsel %vm650, %v646, 1326507024
    %v661 = vsel %vm649, %v643, %v660
    %v662 = vsel %vm648, %v659, %v661
    %v663 = vshll.u32 %v623, 8
    %v664 = vmul.u32.u64.compose %v663, %v662
    %v665 = vextract.low.u32 %v664
    %v666 = vextract.high.u32 %v664
    %v667 = vmul.u32.u64.compose %v663, %v658
    %v668 = vextract.low.u32 %v667
    %v669 = vextract.high.u32 %v667
    %v670 = vmul.u32 %v663, %v654
    %v671 = vadd.s32 %v666, %v668
    %vm672 = vc.u32 %v666, %v668
    %v673 = vadd.s32 %v669, 1
    %v674 = vsel %vm672, %v673, %v669
    %v675 = vadd.s32 %v670, %v674
    %v676 = vadd.s32 %v675, 536870912
    %v677 = vshrl.u32 %v676, 30
    %v678 = vshll.u32 %v677, 30
    %v679 = vsub.s32 %v675, %v678
    %vm680 = vcmp.lt.s32.totalorder %v679, 0
    %v681 = vsub.s32 0, %v679
    %v682 = vsel %vm680, %v681, %v679
    %v683 = vclz %v682
    %v684 = vsub.s32 %v683, 2
    %vm685 = vcmp.gt.s32.totalorder 0, %v684
    %v686 = vsel %vm685, 0, %v684
    %v687 = vsub.s32 32, %v686
    %v688 = vshll.u32 %v679, %v686
    %v689 = vshrl.u32 %v671, %v687
    %v690 = vor.u32 %v688, %v689
    %v691 = vsub.s32 4294967266, %v686
    %v692 = vadd.s32 %v691, 127
    %v693 = vshll.u32 %v692, 23
    %v694 = vor.u32 4788187, %v693
    %v695 = vand.u32 2147483647, %v694
    %v697 = vcvt.s32.f32 %v690
    %v698 = vmul.f32 %v697, %v695
    %v699 = vxor.u32 %v698, 2147483648
    %v700 = vsel %vm617, %v699, %v698
    %v701 = vsub.s32 4, %v677
    %v702 = vsel %vm617, %v701, %v677
    %v703 = vsel %vm616, %v614, %v700
    %v704 = vsel %vm616, 0, %v702
    %v705 = vcosq.f32.pop %v703
    %v706 = vsinq.f32.pop %v703
    %vm707 = vweird.f32 %v614
    %v708 = vadd.s32 %v704, 3
    %v709 = vand.u32 %v708, 3
    %vm710 = vcmp.lt.s32.totalorder %v709, 2
    %vm711 = vcmp.eq.s32.totalorder %v709, 0
    %v712 = vxor.u32 %v706, 2147483648
    %v713 = vsel %vm711, %v705, %v712
    %vm714 = vcmp.eq.s32.totalorder %v709, 2
    %v715 = vxor.u32 %v705, 2147483648
    %v716 = vsel %vm714, %v715, %v706
    %v717 = vsel %vm710, %v713, %v716
    %v718 = vsel %vm707, nan, %v717
    %v719 = vstv %s609
    %v720 = vmul.f32 %v719, %v718
    %v721 = vadd.f32 %v607, %v720
    %s722 = sld [smem:[#allocation2 + $0x6]]
    %s723 = sld [smem:[#allocation2 + $0x16]]
    %s724 = sld [smem:[#allocation2 + $0x26]]
    %v725 = vstv %s722
    %v726 = vmul.f32 %v35, %v725
    %v727 = vstv %s724
    %v728 = vadd.f32 %v726, %v727
    %v729 = vand.u32 2147483647, %v728
    %vm730 = vcmp.le.f32.partialorder %v729, 0.7853982
    %vm731 = vcmp.lt.s32.totalorder %v728, 0
    %v732 = vand.u32 %v728, 2139095040
    %v733 = vshrl.u32 %v732, 23
    %v734 = vsub.s32 %v733, 127
    %v735 = vand.u32 2147483647, %v728
    %v736 = vand.u32 %v735, 8388607
    %v737 = vor.u32 %v736, 8388608
    %v738 = vsub.s32 0, %v737
    %v739 = vadd.s32 %v734, 1
    %vm740 = vcmp.gt.s32.totalorder %v739, 0
    %v741 = vsel %vm740, %v739, 0
    %v742 = vshrl.u32 %v741, 5
    %v743 = vand.u32 %v741, 31
    %v744 = vsub.s32 32, %v743
    %v745 = vshrl.u32 683565275, %v744
    %v746 = vshll.u32 683565275, %v743
    %v747 = vshrl.u32 2475754826, %v744
    %v748 = vor.u32 %v746, %v747
    %v749 = vshll.u32 2475754826, %v743
    %v750 = vshrl.u32 2131351028, %v744
    %v751 = vor.u32 %v749, %v750
    %v752 = vshll.u32 2131351028, %v743
    %v753 = vshrl.u32 2102212464, %v744
    %v754 = vor.u32 %v752, %v753
    %v755 = vshll.u32 2102212464, %v743
    %v756 = vshrl.u32 920167782, %v744
    %v757 = vor.u32 %v755, %v756
    %v758 = vshll.u32 920167782, %v743
    %v759 = vshrl.u32 1326507024, %v744
    %v760 = vor.u32 %v758, %v759
    %vm761 = vcmp.lt.s32.totalorder %v742, 1
    %vm762 = vcmp.lt.s32.totalorder %v742, 2
    %vm763 = vcmp.lt.s32.totalorder %v742, 3
    %vm764 = vcmp.lt.s32.totalorder %v742, 4
    %v765 = vsel %vm761, %v745, %v748
    %v766 = vsel %vm764, %v754, 2102212464
    %v767 = vsel %vm763, %v751, %v766
    %v768 = vsel %vm762, %v765, %v767
    %v769 = vsel %vm761, %v748, %v751
    %v770 = vsel %vm764, %v757, 920167782
    %v771 = vsel %vm763, %v754, %v770
    %v772 = vsel %vm762, %v769, %v771
    %v773 = vsel %vm761, %v751, %v754
    %v774 = vsel %vm764, %v760, 1326507024
    %v775 = vsel %vm763, %v757, %v774
    %v776 = vsel %vm762, %v773, %v775
    %v777 = vshll.u32 %v737, 8
    %v778 = vmul.u32.u64.compose %v777, %v776
    %v779 = vextract.low.u32 %v778
    %v780 = vextract.high.u32 %v778
    %v781 = vmul.u32.u64.compose %v777, %v772
    %v782 = vextract.low.u32 %v781
    %v783 = vextract.high.u32 %v781
    %v784 = vmul.u32 %v777, %v768
    %v785 = vadd.s32 %v780, %v782
    %vm786 = vc.u32 %v780, %v782
    %v787 = vadd.s32 %v783, 1
    %v788 = vsel %vm786, %v787, %v783
    %v789 = vadd.s32 %v784, %v788
    %v790 = vadd.s32 %v789, 536870912
    %v791 = vshrl.u32 %v790, 30
    %v792 = vshll.u32 %v791, 30
    %v793 = vsub.s32 %v789, %v792
    %vm794 = vcmp.lt.s32.totalorder %v793, 0
    %v795 = vsub.s32 0, %v793
    %v796 = vsel %vm794, %v795, %v793
    %v797 = vclz %v796
    %v798 = vsub.s32 %v797, 2
    %vm799 = vcmp.gt.s32.totalorder 0, %v798
    %v800 = vsel %vm799, 0, %v798
    %v801 = vsub.s32 32, %v800
    %v802 = vshll.u32 %v793, %v800
    %v803 = vshrl.u32 %v785, %v801
    %v804 = vor.u32 %v802, %v803
    %v805 = vsub.s32 4294967266, %v800
    %v806 = vadd.s32 %v805, 127
    %v807 = vshll.u32 %v806, 23
    %v808 = vor.u32 4788187, %v807
    %v809 = vand.u32 2147483647, %v808
    %v811 = vcvt.s32.f32 %v804
    %v812 = vmul.f32 %v811, %v809
    %v813 = vxor.u32 %v812, 2147483648
    %v814 = vsel %vm731, %v813, %v812
    %v815 = vsub.s32 4, %v791
    %v816 = vsel %vm731, %v815, %v791
    %v817 = vsel %vm730, %v728, %v814
    %v818 = vsel %vm730, 0, %v816
    %v819 = vcosq.f32.pop %v817
    %v820 = vsinq.f32.pop %v817
    %vm821 = vweird.f32 %v728
    %v822 = vadd.s32 %v818, 3
    %v823 = vand.u32 %v822, 3
    %vm824 = vcmp.lt.s32.totalorder %v823, 2
    %vm825 = vcmp.eq.s32.totalorder %v823, 0
    %v826 = vxor.u32 %v820, 2147483648
    %v827 = vsel %vm825, %v819, %v826
    %vm828 = vcmp.eq.s32.totalorder %v823, 2
    %v829 = vxor.u32 %v819, 2147483648
    %v830 = vsel %vm828, %v829, %v820
    %v831 = vsel %vm824, %v827, %v830
    %v832 = vsel %vm821, nan, %v831
    %v833 = vstv %s723
    %v834 = vmul.f32 %v833, %v832
    %v835 = vadd.f32 %v721, %v834
    %s836 = sld [smem:[#allocation2 + $0x7]]
    %s837 = sld [smem:[#allocation2 + $0x17]]
    %s838 = sld [smem:[#allocation2 + $0x27]]
    %v839 = vstv %s836
    %v840 = vmul.f32 %v35, %v839
    %v841 = vstv %s838
    %v842 = vadd.f32 %v840, %v841
    %v843 = vand.u32 2147483647, %v842
    %vm844 = vcmp.le.f32.partialorder %v843, 0.7853982
    %vm845 = vcmp.lt.s32.totalorder %v842, 0
    %v846 = vand.u32 %v842, 2139095040
    %v847 = vshrl.u32 %v846, 23
    %v848 = vsub.s32 %v847, 127
    %v849 = vand.u32 2147483647, %v842
    %v850 = vand.u32 %v849, 8388607
    %v851 = vor.u32 %v850, 8388608
    %v852 = vsub.s32 0, %v851
    %v853 = vadd.s32 %v848, 1
    %vm854 = vcmp.gt.s32.totalorder %v853, 0
    %v855 = vsel %vm854, %v853, 0
    %v856 = vshrl.u32 %v855, 5
    %v857 = vand.u32 %v855, 31
    %v858 = vsub.s32 32, %v857
    %v859 = vshrl.u32 683565275, %v858
    %v860 = vshll.u32 683565275, %v857
    %v861 = vshrl.u32 2475754826, %v858
    %v862 = vor.u32 %v860, %v861
    %v863 = vshll.u32 2475754826, %v857
    %v864 = vshrl.u32 2131351028, %v858
    %v865 = vor.u32 %v863, %v864
    %v866 = vshll.u32 2131351028, %v857
    %v867 = vshrl.u32 2102212464, %v858
    %v868 = vor.u32 %v866, %v867
    %v869 = vshll.u32 2102212464, %v857
    %v870 = vshrl.u32 920167782, %v858
    %v871 = vor.u32 %v869, %v870
    %v872 = vshll.u32 920167782, %v857
    %v873 = vshrl.u32 1326507024, %v858
    %v874 = vor.u32 %v872, %v873
    %vm875 = vcmp.lt.s32.totalorder %v856, 1
    %vm876 = vcmp.lt.s32.totalorder %v856, 2
    %vm877 = vcmp.lt.s32.totalorder %v856, 3
    %vm878 = vcmp.lt.s32.totalorder %v856, 4
    %v879 = vsel %vm875, %v859, %v862
    %v880 = vsel %vm878, %v868, 2102212464
    %v881 = vsel %vm877, %v865, %v880
    %v882 = vsel %vm876, %v879, %v881
    %v883 = vsel %vm875, %v862, %v865
    %v884 = vsel %vm878, %v871, 920167782
    %v885 = vsel %vm877, %v868, %v884
    %v886 = vsel %vm876, %v883, %v885
    %v887 = vsel %vm875, %v865, %v868
    %v888 = vsel %vm878, %v874, 1326507024
    %v889 = vsel %vm877, %v871, %v888
    %v890 = vsel %vm876, %v887, %v889
    %v891 = vshll.u32 %v851, 8
    %v892 = vmul.u32.u64.compose %v891, %v890
    %v893 = vextract.low.u32 %v892
    %v894 = vextract.high.u32 %v892
    %v895 = vmul.u32.u64.compose %v891, %v886
    %v896 = vextract.low.u32 %v895
    %v897 = vextract.high.u32 %v895
    %v898 = vmul.u32 %v891, %v882
    %v899 = vadd.s32 %v894, %v896
    %vm900 = vc.u32 %v894, %v896
    %v901 = vadd.s32 %v897, 1
    %v902 = vsel %vm900, %v901, %v897
    %v903 = vadd.s32 %v898, %v902
    %v904 = vadd.s32 %v903, 536870912
    %v905 = vshrl.u32 %v904, 30
    %v906 = vshll.u32 %v905, 30
    %v907 = vsub.s32 %v903, %v906
    %vm908 = vcmp.lt.s32.totalorder %v907, 0
    %v909 = vsub.s32 0, %v907
    %v910 = vsel %vm908, %v909, %v907
    %v911 = vclz %v910
    %v912 = vsub.s32 %v911, 2
    %vm913 = vcmp.gt.s32.totalorder 0, %v912
    %v914 = vsel %vm913, 0, %v912
    %v915 = vsub.s32 32, %v914
    %v916 = vshll.u32 %v907, %v914
    %v917 = vshrl.u32 %v899, %v915
    %v918 = vor.u32 %v916, %v917
    %v919 = vsub.s32 4294967266, %v914
    %v920 = vadd.s32 %v919, 127
    %v921 = vshll.u32 %v920, 23
    %v922 = vor.u32 4788187, %v921
    %v923 = vand.u32 2147483647, %v922
    %v925 = vcvt.s32.f32 %v918
    %v926 = vmul.f32 %v925, %v923
    %v927 = vxor.u32 %v926, 2147483648
    %v928 = vsel %vm845, %v927, %v926
    %v929 = vsub.s32 4, %v905
    %v930 = vsel %vm845, %v929, %v905
    %v931 = vsel %vm844, %v842, %v928
    %v932 = vsel %vm844, 0, %v930
    %v933 = vcosq.f32.pop %v931
    %v934 = vsinq.f32.pop %v931
    %vm935 = vweird.f32 %v842
    %v936 = vadd.s32 %v932, 3
    %v937 = vand.u32 %v936, 3
    %vm938 = vcmp.lt.s32.totalorder %v937, 2
    %vm939 = vcmp.eq.s32.totalorder %v937, 0
    %v940 = vxor.u32 %v934, 2147483648
    %v941 = vsel %vm939, %v933, %v940
    %vm942 = vcmp.eq.s32.totalorder %v937, 2
    %v943 = vxor.u32 %v933, 2147483648
    %v944 = vsel %vm942, %v943, %v934
    %v945 = vsel %vm938, %v941, %v944
    %v946 = vsel %vm935, nan, %v945
    %v947 = vstv %s837
    %v948 = vmul.f32 %v947, %v946
    %v949 = vadd.f32 %v835, %v948
    %s950 = sld [smem:[#allocation2 + $0x8]]
    %s951 = sld [smem:[#allocation2 + $0x18]]
    %s952 = sld [smem:[#allocation2 + $0x28]]
    %v953 = vstv %s950
    %v954 = vmul.f32 %v35, %v953
    %v955 = vstv %s952
    %v956 = vadd.f32 %v954, %v955
    %v957 = vand.u32 2147483647, %v956
    %vm958 = vcmp.le.f32.partialorder %v957, 0.7853982
    %vm959 = vcmp.lt.s32.totalorder %v956, 0
    %v960 = vand.u32 %v956, 2139095040
    %v961 = vshrl.u32 %v960, 23
    %v962 = vsub.s32 %v961, 127
    %v963 = vand.u32 2147483647, %v956
    %v964 = vand.u32 %v963, 8388607
    %v965 = vor.u32 %v964, 8388608
    %v966 = vsub.s32 0, %v965
    %v967 = vadd.s32 %v962, 1
    %vm968 = vcmp.gt.s32.totalorder %v967, 0
    %v969 = vsel %vm968, %v967, 0
    %v970 = vshrl.u32 %v969, 5
    %v971 = vand.u32 %v969, 31
    %v972 = vsub.s32 32, %v971
    %v973 = vshrl.u32 683565275, %v972
    %v974 = vshll.u32 683565275, %v971
    %v975 = vshrl.u32 2475754826, %v972
    %v976 = vor.u32 %v974, %v975
    %v977 = vshll.u32 2475754826, %v971
    %v978 = vshrl.u32 2131351028, %v972
    %v979 = vor.u32 %v977, %v978
    %v980 = vshll.u32 2131351028, %v971
    %v981 = vshrl.u32 2102212464, %v972
    %v982 = vor.u32 %v980, %v981
    %v983 = vshll.u32 2102212464, %v971
    %v984 = vshrl.u32 920167782, %v972
    %v985 = vor.u32 %v983, %v984
    %v986 = vshll.u32 920167782, %v971
    %v987 = vshrl.u32 1326507024, %v972
    %v988 = vor.u32 %v986, %v987
    %vm989 = vcmp.lt.s32.totalorder %v970, 1
    %vm990 = vcmp.lt.s32.totalorder %v970, 2
    %vm991 = vcmp.lt.s32.totalorder %v970, 3
    %vm992 = vcmp.lt.s32.totalorder %v970, 4
    %v993 = vsel %vm989, %v973, %v976
    %v994 = vsel %vm992, %v982, 2102212464
    %v995 = vsel %vm991, %v979, %v994
    %v996 = vsel %vm990, %v993, %v995
    %v997 = vsel %vm989, %v976, %v979
    %v998 = vsel %vm992, %v985, 920167782
    %v999 = vsel %vm991, %v982, %v998
    %v1000 = vsel %vm990, %v997, %v999
    %v1001 = vsel %vm989, %v979, %v982
    %v1002 = vsel %vm992, %v988, 1326507024
    %v1003 = vsel %vm991, %v985, %v1002
    %v1004 = vsel %vm990, %v1001, %v1003
    %v1005 = vshll.u32 %v965, 8
    %v1006 = vmul.u32.u64.compose %v1005, %v1004
    %v1007 = vextract.low.u32 %v1006
    %v1008 = vextract.high.u32 %v1006
    %v1009 = vmul.u32.u64.compose %v1005, %v1000
    %v1010 = vextract.low.u32 %v1009
    %v1011 = vextract.high.u32 %v1009
    %v1012 = vmul.u32 %v1005, %v996
    %v1013 = vadd.s32 %v1008, %v1010
    %vm1014 = vc.u32 %v1008, %v1010
    %v1015 = vadd.s32 %v1011, 1
    %v1016 = vsel %vm1014, %v1015, %v1011
    %v1017 = vadd.s32 %v1012, %v1016
    %v1018 = vadd.s32 %v1017, 536870912
    %v1019 = vshrl.u32 %v1018, 30
    %v1020 = vshll.u32 %v1019, 30
    %v1021 = vsub.s32 %v1017, %v1020
    %vm1022 = vcmp.lt.s32.totalorder %v1021, 0
    %v1023 = vsub.s32 0, %v1021
    %v1024 = vsel %vm1022, %v1023, %v1021
    %v1025 = vclz %v1024
    %v1026 = vsub.s32 %v1025, 2
    %vm1027 = vcmp.gt.s32.totalorder 0, %v1026
    %v1028 = vsel %vm1027, 0, %v1026
    %v1029 = vsub.s32 32, %v1028
    %v1030 = vshll.u32 %v1021, %v1028
    %v1031 = vshrl.u32 %v1013, %v1029
    %v1032 = vor.u32 %v1030, %v1031
    %v1033 = vsub.s32 4294967266, %v1028
    %v1034 = vadd.s32 %v1033, 127
    %v1035 = vshll.u32 %v1034, 23
    %v1036 = vor.u32 4788187, %v1035
    %v1037 = vand.u32 2147483647, %v1036
    %v1039 = vcvt.s32.f32 %v1032
    %v1040 = vmul.f32 %v1039, %v1037
    %v1041 = vxor.u32 %v1040, 2147483648
    %v1042 = vsel %vm959, %v1041, %v1040
    %v1043 = vsub.s32 4, %v1019
    %v1044 = vsel %vm959, %v1043, %v1019
    %v1045 = vsel %vm958, %v956, %v1042
    %v1046 = vsel %vm958, 0, %v1044
    %v1047 = vcosq.f32.pop %v1045
    %v1048 = vsinq.f32.pop %v1045
    %vm1049 = vweird.f32 %v956
    %v1050 = vadd.s32 %v1046, 3
    %v1051 = vand.u32 %v1050, 3
    %vm1052 = vcmp.lt.s32.totalorder %v1051, 2
    %vm1053 = vcmp.eq.s32.totalorder %v1051, 0
    %v1054 = vxor.u32 %v1048, 2147483648
    %v1055 = vsel %vm1053, %v1047, %v1054
    %vm1056 = vcmp.eq.s32.totalorder %v1051, 2
    %v1057 = vxor.u32 %v1047, 2147483648
    %v1058 = vsel %vm1056, %v1057, %v1048
    %v1059 = vsel %vm1052, %v1055, %v1058
    %v1060 = vsel %vm1049, nan, %v1059
    %v1061 = vstv %s951
    %v1062 = vmul.f32 %v1061, %v1060
    %v1063 = vadd.f32 %v949, %v1062
    %s1064 = sld [smem:[#allocation2 + $0x9]]
    %s1065 = sld [smem:[#allocation2 + $0x19]]
    %s1066 = sld [smem:[#allocation2 + $0x29]]
    %v1067 = vstv %s1064
    %v1068 = vmul.f32 %v35, %v1067
    %v1069 = vstv %s1066
    %v1070 = vadd.f32 %v1068, %v1069
    %v1071 = vand.u32 2147483647, %v1070
    %vm1072 = vcmp.le.f32.partialorder %v1071, 0.7853982
    %vm1073 = vcmp.lt.s32.totalorder %v1070, 0
    %v1074 = vand.u32 %v1070, 2139095040
    %v1075 = vshrl.u32 %v1074, 23
    %v1076 = vsub.s32 %v1075, 127
    %v1077 = vand.u32 2147483647, %v1070
    %v1078 = vand.u32 %v1077, 8388607
    %v1079 = vor.u32 %v1078, 8388608
    %v1080 = vsub.s32 0, %v1079
    %v1081 = vadd.s32 %v1076, 1
    %vm1082 = vcmp.gt.s32.totalorder %v1081, 0
    %v1083 = vsel %vm1082, %v1081, 0
    %v1084 = vshrl.u32 %v1083, 5
    %v1085 = vand.u32 %v1083, 31
    %v1086 = vsub.s32 32, %v1085
    %v1087 = vshrl.u32 683565275, %v1086
    %v1088 = vshll.u32 683565275, %v1085
    %v1089 = vshrl.u32 2475754826, %v1086
    %v1090 = vor.u32 %v1088, %v1089
    %v1091 = vshll.u32 2475754826, %v1085
    %v1092 = vshrl.u32 2131351028, %v1086
    %v1093 = vor.u32 %v1091, %v1092
    %v1094 = vshll.u32 2131351028, %v1085
    %v1095 = vshrl.u32 2102212464, %v1086
    %v1096 = vor.u32 %v1094, %v1095
    %v1097 = vshll.u32 2102212464, %v1085
    %v1098 = vshrl.u32 920167782, %v1086
    %v1099 = vor.u32 %v1097, %v1098
    %v1100 = vshll.u32 920167782, %v1085
    %v1101 = vshrl.u32 1326507024, %v1086
    %v1102 = vor.u32 %v1100, %v1101
    %vm1103 = vcmp.lt.s32.totalorder %v1084, 1
    %vm1104 = vcmp.lt.s32.totalorder %v1084, 2
    %vm1105 = vcmp.lt.s32.totalorder %v1084, 3
    %vm1106 = vcmp.lt.s32.totalorder %v1084, 4
    %v1107 = vsel %vm1103, %v1087, %v1090
    %v1108 = vsel %vm1106, %v1096, 2102212464
    %v1109 = vsel %vm1105, %v1093, %v1108
    %v1110 = vsel %vm1104, %v1107, %v1109
    %v1111 = vsel %vm1103, %v1090, %v1093
    %v1112 = vsel %vm1106, %v1099, 920167782
    %v1113 = vsel %vm1105, %v1096, %v1112
    %v1114 = vsel %vm1104, %v1111, %v1113
    %v1115 = vsel %vm1103, %v1093, %v1096
    %v1116 = vsel %vm1106, %v1102, 1326507024
    %v1117 = vsel %vm1105, %v1099, %v1116
    %v1118 = vsel %vm1104, %v1115, %v1117
    %v1119 = vshll.u32 %v1079, 8
    %v1120 = vmul.u32.u64.compose %v1119, %v1118
    %v1121 = vextract.low.u32 %v1120
    %v1122 = vextract.high.u32 %v1120
    %v1123 = vmul.u32.u64.compose %v1119, %v1114
    %v1124 = vextract.low.u32 %v1123
    %v1125 = vextract.high.u32 %v1123
    %v1126 = vmul.u32 %v1119, %v1110
    %v1127 = vadd.s32 %v1122, %v1124
    %vm1128 = vc.u32 %v1122, %v1124
    %v1129 = vadd.s32 %v1125, 1
    %v1130 = vsel %vm1128, %v1129, %v1125
    %v1131 = vadd.s32 %v1126, %v1130
    %v1132 = vadd.s32 %v1131, 536870912
    %v1133 = vshrl.u32 %v1132, 30
    %v1134 = vshll.u32 %v1133, 30
    %v1135 = vsub.s32 %v1131, %v1134
    %vm1136 = vcmp.lt.s32.totalorder %v1135, 0
    %v1137 = vsub.s32 0, %v1135
    %v1138 = vsel %vm1136, %v1137, %v1135
    %v1139 = vclz %v1138
    %v1140 = vsub.s32 %v1139, 2
    %vm1141 = vcmp.gt.s32.totalorder 0, %v1140
    %v1142 = vsel %vm1141, 0, %v1140
    %v1143 = vsub.s32 32, %v1142
    %v1144 = vshll.u32 %v1135, %v1142
    %v1145 = vshrl.u32 %v1127, %v1143
    %v1146 = vor.u32 %v1144, %v1145
    %v1147 = vsub.s32 4294967266, %v1142
    %v1148 = vadd.s32 %v1147, 127
    %v1149 = vshll.u32 %v1148, 23
    %v1150 = vor.u32 4788187, %v1149
    %v1151 = vand.u32 2147483647, %v1150
    %v1153 = vcvt.s32.f32 %v1146
    %v1154 = vmul.f32 %v1153, %v1151
    %v1155 = vxor.u32 %v1154, 2147483648
    %v1156 = vsel %vm1073, %v1155, %v1154
    %v1157 = vsub.s32 4, %v1133
    %v1158 = vsel %vm1073, %v1157, %v1133
    %v1159 = vsel %vm1072, %v1070, %v1156
    %v1160 = vsel %vm1072, 0, %v1158
    %v1161 = vcosq.f32.pop %v1159
    %v1162 = vsinq.f32.pop %v1159
    %vm1163 = vweird.f32 %v1070
    %v1164 = vadd.s32 %v1160, 3
    %v1165 = vand.u32 %v1164, 3
    %vm1166 = vcmp.lt.s32.totalorder %v1165, 2
    %vm1167 = vcmp.eq.s32.totalorder %v1165, 0
    %v1168 = vxor.u32 %v1162, 2147483648
    %v1169 = vsel %vm1167, %v1161, %v1168
    %vm1170 = vcmp.eq.s32.totalorder %v1165, 2
    %v1171 = vxor.u32 %v1161, 2147483648
    %v1172 = vsel %vm1170, %v1171, %v1162
    %v1173 = vsel %vm1166, %v1169, %v1172
    %v1174 = vsel %vm1163, nan, %v1173
    %v1175 = vstv %s1065
    %v1176 = vmul.f32 %v1175, %v1174
    %v1177 = vadd.f32 %v1063, %v1176
    %s1178 = sld [smem:[#allocation2 + $0xa]]
    %s1179 = sld [smem:[#allocation2 + $0x1a]]
    %s1180 = sld [smem:[#allocation2 + $0x2a]]
    %v1181 = vstv %s1178
    %v1182 = vmul.f32 %v35, %v1181
    %v1183 = vstv %s1180
    %v1184 = vadd.f32 %v1182, %v1183
    %v1185 = vand.u32 2147483647, %v1184
    %vm1186 = vcmp.le.f32.partialorder %v1185, 0.7853982
    %vm1187 = vcmp.lt.s32.totalorder %v1184, 0
    %v1188 = vand.u32 %v1184, 2139095040
    %v1189 = vshrl.u32 %v1188, 23
    %v1190 = vsub.s32 %v1189, 127
    %v1191 = vand.u32 2147483647, %v1184
    %v1192 = vand.u32 %v1191, 8388607
    %v1193 = vor.u32 %v1192, 8388608
    %v1194 = vsub.s32 0, %v1193
    %v1195 = vadd.s32 %v1190, 1
    %vm1196 = vcmp.gt.s32.totalorder %v1195, 0
    %v1197 = vsel %vm1196, %v1195, 0
    %v1198 = vshrl.u32 %v1197, 5
    %v1199 = vand.u32 %v1197, 31
    %v1200 = vsub.s32 32, %v1199
    %v1201 = vshrl.u32 683565275, %v1200
    %v1202 = vshll.u32 683565275, %v1199
    %v1203 = vshrl.u32 2475754826, %v1200
    %v1204 = vor.u32 %v1202, %v1203
    %v1205 = vshll.u32 2475754826, %v1199
    %v1206 = vshrl.u32 2131351028, %v1200
    %v1207 = vor.u32 %v1205, %v1206
    %v1208 = vshll.u32 2131351028, %v1199
    %v1209 = vshrl.u32 2102212464, %v1200
    %v1210 = vor.u32 %v1208, %v1209
    %v1211 = vshll.u32 2102212464, %v1199
    %v1212 = vshrl.u32 920167782, %v1200
    %v1213 = vor.u32 %v1211, %v1212
    %v1214 = vshll.u32 920167782, %v1199
    %v1215 = vshrl.u32 1326507024, %v1200
    %v1216 = vor.u32 %v1214, %v1215
    %vm1217 = vcmp.lt.s32.totalorder %v1198, 1
    %vm1218 = vcmp.lt.s32.totalorder %v1198, 2
    %vm1219 = vcmp.lt.s32.totalorder %v1198, 3
    %vm1220 = vcmp.lt.s32.totalorder %v1198, 4
    %v1221 = vsel %vm1217, %v1201, %v1204
    %v1222 = vsel %vm1220, %v1210, 2102212464
    %v1223 = vsel %vm1219, %v1207, %v1222
    %v1224 = vsel %vm1218, %v1221, %v1223
    %v1225 = vsel %vm1217, %v1204, %v1207
    %v1226 = vsel %vm1220, %v1213, 920167782
    %v1227 = vsel %vm1219, %v1210, %v1226
    %v1228 = vsel %vm1218, %v1225, %v1227
    %v1229 = vsel %vm1217, %v1207, %v1210
    %v1230 = vsel %vm1220, %v1216, 1326507024
    %v1231 = vsel %vm1219, %v1213, %v1230
    %v1232 = vsel %vm1218, %v1229, %v1231
    %v1233 = vshll.u32 %v1193, 8
    %v1234 = vmul.u32.u64.compose %v1233, %v1232
    %v1235 = vextract.low.u32 %v1234
    %v1236 = vextract.high.u32 %v1234
    %v1237 = vmul.u32.u64.compose %v1233, %v1228
    %v1238 = vextract.low.u32 %v1237
    %v1239 = vextract.high.u32 %v1237
    %v1240 = vmul.u32 %v1233, %v1224
    %v1241 = vadd.s32 %v1236, %v1238
    %vm1242 = vc.u32 %v1236, %v1238
    %v1243 = vadd.s32 %v1239, 1
    %v1244 = vsel %vm1242, %v1243, %v1239
    %v1245 = vadd.s32 %v1240, %v1244
    %v1246 = vadd.s32 %v1245, 536870912
    %v1247 = vshrl.u32 %v1246, 30
    %v1248 = vshll.u32 %v1247, 30
    %v1249 = vsub.s32 %v1245, %v1248
    %vm1250 = vcmp.lt.s32.totalorder %v1249, 0
    %v1251 = vsub.s32 0, %v1249
    %v1252 = vsel %vm1250, %v1251, %v1249
    %v1253 = vclz %v1252
    %v1254 = vsub.s32 %v1253, 2
    %vm1255 = vcmp.gt.s32.totalorder 0, %v1254
    %v1256 = vsel %vm1255, 0, %v1254
    %v1257 = vsub.s32 32, %v1256
    %v1258 = vshll.u32 %v1249, %v1256
    %v1259 = vshrl.u32 %v1241, %v1257
    %v1260 = vor.u32 %v1258, %v1259
    %v1261 = vsub.s32 4294967266, %v1256
    %v1262 = vadd.s32 %v1261, 127
    %v1263 = vshll.u32 %v1262, 23
    %v1264 = vor.u32 4788187, %v1263
    %v1265 = vand.u32 2147483647, %v1264
    %v1267 = vcvt.s32.f32 %v1260
    %v1268 = vmul.f32 %v1267, %v1265
    %v1269 = vxor.u32 %v1268, 2147483648
    %v1270 = vsel %vm1187, %v1269, %v1268
    %v1271 = vsub.s32 4, %v1247
    %v1272 = vsel %vm1187, %v1271, %v1247
    %v1273 = vsel %vm1186, %v1184, %v1270
    %v1274 = vsel %vm1186, 0, %v1272
    %v1275 = vcosq.f32.pop %v1273
    %v1276 = vsinq.f32.pop %v1273
    %vm1277 = vweird.f32 %v1184
    %v1278 = vadd.s32 %v1274, 3
    %v1279 = vand.u32 %v1278, 3
    %vm1280 = vcmp.lt.s32.totalorder %v1279, 2
    %vm1281 = vcmp.eq.s32.totalorder %v1279, 0
    %v1282 = vxor.u32 %v1276, 2147483648
    %v1283 = vsel %vm1281, %v1275, %v1282
    %vm1284 = vcmp.eq.s32.totalorder %v1279, 2
    %v1285 = vxor.u32 %v1275, 2147483648
    %v1286 = vsel %vm1284, %v1285, %v1276
    %v1287 = vsel %vm1280, %v1283, %v1286
    %v1288 = vsel %vm1277, nan, %v1287
    %v1289 = vstv %s1179
    %v1290 = vmul.f32 %v1289, %v1288
    %v1291 = vadd.f32 %v1177, %v1290
    %s1292 = sld [smem:[#allocation2 + $0xb]]
    %s1293 = sld [smem:[#allocation2 + $0x1b]]
    %s1294 = sld [smem:[#allocation2 + $0x2b]]
    %v1295 = vstv %s1292
    %v1296 = vmul.f32 %v35, %v1295
    %v1297 = vstv %s1294
    %v1298 = vadd.f32 %v1296, %v1297
    %v1299 = vand.u32 2147483647, %v1298
    %vm1300 = vcmp.le.f32.partialorder %v1299, 0.7853982
    %vm1301 = vcmp.lt.s32.totalorder %v1298, 0
    %v1302 = vand.u32 %v1298, 2139095040
    %v1303 = vshrl.u32 %v1302, 23
    %v1304 = vsub.s32 %v1303, 127
    %v1305 = vand.u32 2147483647, %v1298
    %v1306 = vand.u32 %v1305, 8388607
    %v1307 = vor.u32 %v1306, 8388608
    %v1308 = vsub.s32 0, %v1307
    %v1309 = vadd.s32 %v1304, 1
    %vm1310 = vcmp.gt.s32.totalorder %v1309, 0
    %v1311 = vsel %vm1310, %v1309, 0
    %v1312 = vshrl.u32 %v1311, 5
    %v1313 = vand.u32 %v1311, 31
    %v1314 = vsub.s32 32, %v1313
    %v1315 = vshrl.u32 683565275, %v1314
    %v1316 = vshll.u32 683565275, %v1313
    %v1317 = vshrl.u32 2475754826, %v1314
    %v1318 = vor.u32 %v1316, %v1317
    %v1319 = vshll.u32 2475754826, %v1313
    %v1320 = vshrl.u32 2131351028, %v1314
    %v1321 = vor.u32 %v1319, %v1320
    %v1322 = vshll.u32 2131351028, %v1313
    %v1323 = vshrl.u32 2102212464, %v1314
    %v1324 = vor.u32 %v1322, %v1323
    %v1325 = vshll.u32 2102212464, %v1313
    %v1326 = vshrl.u32 920167782, %v1314
    %v1327 = vor.u32 %v1325, %v1326
    %v1328 = vshll.u32 920167782, %v1313
    %v1329 = vshrl.u32 1326507024, %v1314
    %v1330 = vor.u32 %v1328, %v1329
    %vm1331 = vcmp.lt.s32.totalorder %v1312, 1
    %vm1332 = vcmp.lt.s32.totalorder %v1312, 2
    %vm1333 = vcmp.lt.s32.totalorder %v1312, 3
    %vm1334 = vcmp.lt.s32.totalorder %v1312, 4
    %v1335 = vsel %vm1331, %v1315, %v1318
    %v1336 = vsel %vm1334, %v1324, 2102212464
    %v1337 = vsel %vm1333, %v1321, %v1336
    %v1338 = vsel %vm1332, %v1335, %v1337
    %v1339 = vsel %vm1331, %v1318, %v1321
    %v1340 = vsel %vm1334, %v1327, 920167782
    %v1341 = vsel %vm1333, %v1324, %v1340
    %v1342 = vsel %vm1332, %v1339, %v1341
    %v1343 = vsel %vm1331, %v1321, %v1324
    %v1344 = vsel %vm1334, %v1330, 1326507024
    %v1345 = vsel %vm1333, %v1327, %v1344
    %v1346 = vsel %vm1332, %v1343, %v1345
    %v1347 = vshll.u32 %v1307, 8
    %v1348 = vmul.u32.u64.compose %v1347, %v1346
    %v1349 = vextract.low.u32 %v1348
    %v1350 = vextract.high.u32 %v1348
    %v1351 = vmul.u32.u64.compose %v1347, %v1342
    %v1352 = vextract.low.u32 %v1351
    %v1353 = vextract.high.u32 %v1351
    %v1354 = vmul.u32 %v1347, %v1338
    %v1355 = vadd.s32 %v1350, %v1352
    %vm1356 = vc.u32 %v1350, %v1352
    %v1357 = vadd.s32 %v1353, 1
    %v1358 = vsel %vm1356, %v1357, %v1353
    %v1359 = vadd.s32 %v1354, %v1358
    %v1360 = vadd.s32 %v1359, 536870912
    %v1361 = vshrl.u32 %v1360, 30
    %v1362 = vshll.u32 %v1361, 30
    %v1363 = vsub.s32 %v1359, %v1362
    %vm1364 = vcmp.lt.s32.totalorder %v1363, 0
    %v1365 = vsub.s32 0, %v1363
    %v1366 = vsel %vm1364, %v1365, %v1363
    %v1367 = vclz %v1366
    %v1368 = vsub.s32 %v1367, 2
    %vm1369 = vcmp.gt.s32.totalorder 0, %v1368
    %v1370 = vsel %vm1369, 0, %v1368
    %v1371 = vsub.s32 32, %v1370
    %v1372 = vshll.u32 %v1363, %v1370
    %v1373 = vshrl.u32 %v1355, %v1371
    %v1374 = vor.u32 %v1372, %v1373
    %v1375 = vsub.s32 4294967266, %v1370
    %v1376 = vadd.s32 %v1375, 127
    %v1377 = vshll.u32 %v1376, 23
    %v1378 = vor.u32 4788187, %v1377
    %v1379 = vand.u32 2147483647, %v1378
    %v1381 = vcvt.s32.f32 %v1374
    %v1382 = vmul.f32 %v1381, %v1379
    %v1383 = vxor.u32 %v1382, 2147483648
    %v1384 = vsel %vm1301, %v1383, %v1382
    %v1385 = vsub.s32 4, %v1361
    %v1386 = vsel %vm1301, %v1385, %v1361
    %v1387 = vsel %vm1300, %v1298, %v1384
    %v1388 = vsel %vm1300, 0, %v1386
    %v1389 = vcosq.f32.pop %v1387
    %v1390 = vsinq.f32.pop %v1387
    %vm1391 = vweird.f32 %v1298
    %v1392 = vadd.s32 %v1388, 3
    %v1393 = vand.u32 %v1392, 3
    %vm1394 = vcmp.lt.s32.totalorder %v1393, 2
    %vm1395 = vcmp.eq.s32.totalorder %v1393, 0
    %v1396 = vxor.u32 %v1390, 2147483648
    %v1397 = vsel %vm1395, %v1389, %v1396
    %vm1398 = vcmp.eq.s32.totalorder %v1393, 2
    %v1399 = vxor.u32 %v1389, 2147483648
    %v1400 = vsel %vm1398, %v1399, %v1390
    %v1401 = vsel %vm1394, %v1397, %v1400
    %v1402 = vsel %vm1391, nan, %v1401
    %v1403 = vstv %s1293
    %v1404 = vmul.f32 %v1403, %v1402
    %v1405 = vadd.f32 %v1291, %v1404
    %s1406 = sld [smem:[#allocation2 + $0xc]]
    %s1407 = sld [smem:[#allocation2 + $0x1c]]
    %s1408 = sld [smem:[#allocation2 + $0x2c]]
    %v1409 = vstv %s1406
    %v1410 = vmul.f32 %v35, %v1409
    %v1411 = vstv %s1408
    %v1412 = vadd.f32 %v1410, %v1411
    %v1413 = vand.u32 2147483647, %v1412
    %vm1414 = vcmp.le.f32.partialorder %v1413, 0.7853982
    %vm1415 = vcmp.lt.s32.totalorder %v1412, 0
    %v1416 = vand.u32 %v1412, 2139095040
    %v1417 = vshrl.u32 %v1416, 23
    %v1418 = vsub.s32 %v1417, 127
    %v1419 = vand.u32 2147483647, %v1412
    %v1420 = vand.u32 %v1419, 8388607
    %v1421 = vor.u32 %v1420, 8388608
    %v1422 = vsub.s32 0, %v1421
    %v1423 = vadd.s32 %v1418, 1
    %vm1424 = vcmp.gt.s32.totalorder %v1423, 0
    %v1425 = vsel %vm1424, %v1423, 0
    %v1426 = vshrl.u32 %v1425, 5
    %v1427 = vand.u32 %v1425, 31
    %v1428 = vsub.s32 32, %v1427
    %v1429 = vshrl.u32 683565275, %v1428
    %v1430 = vshll.u32 683565275, %v1427
    %v1431 = vshrl.u32 2475754826, %v1428
    %v1432 = vor.u32 %v1430, %v1431
    %v1433 = vshll.u32 2475754826, %v1427
    %v1434 = vshrl.u32 2131351028, %v1428
    %v1435 = vor.u32 %v1433, %v1434
    %v1436 = vshll.u32 2131351028, %v1427
    %v1437 = vshrl.u32 2102212464, %v1428
    %v1438 = vor.u32 %v1436, %v1437
    %v1439 = vshll.u32 2102212464, %v1427
    %v1440 = vshrl.u32 920167782, %v1428
    %v1441 = vor.u32 %v1439, %v1440
    %v1442 = vshll.u32 920167782, %v1427
    %v1443 = vshrl.u32 1326507024, %v1428
    %v1444 = vor.u32 %v1442, %v1443
    %vm1445 = vcmp.lt.s32.totalorder %v1426, 1
    %vm1446 = vcmp.lt.s32.totalorder %v1426, 2
    %vm1447 = vcmp.lt.s32.totalorder %v1426, 3
    %vm1448 = vcmp.lt.s32.totalorder %v1426, 4
    %v1449 = vsel %vm1445, %v1429, %v1432
    %v1450 = vsel %vm1448, %v1438, 2102212464
    %v1451 = vsel %vm1447, %v1435, %v1450
    %v1452 = vsel %vm1446, %v1449, %v1451
    %v1453 = vsel %vm1445, %v1432, %v1435
    %v1454 = vsel %vm1448, %v1441, 920167782
    %v1455 = vsel %vm1447, %v1438, %v1454
    %v1456 = vsel %vm1446, %v1453, %v1455
    %v1457 = vsel %vm1445, %v1435, %v1438
    %v1458 = vsel %vm1448, %v1444, 1326507024
    %v1459 = vsel %vm1447, %v1441, %v1458
    %v1460 = vsel %vm1446, %v1457, %v1459
    %v1461 = vshll.u32 %v1421, 8
    %v1462 = vmul.u32.u64.compose %v1461, %v1460
    %v1463 = vextract.low.u32 %v1462
    %v1464 = vextract.high.u32 %v1462
    %v1465 = vmul.u32.u64.compose %v1461, %v1456
    %v1466 = vextract.low.u32 %v1465
    %v1467 = vextract.high.u32 %v1465
    %v1468 = vmul.u32 %v1461, %v1452
    %v1469 = vadd.s32 %v1464, %v1466
    %vm1470 = vc.u32 %v1464, %v1466
    %v1471 = vadd.s32 %v1467, 1
    %v1472 = vsel %vm1470, %v1471, %v1467
    %v1473 = vadd.s32 %v1468, %v1472
    %v1474 = vadd.s32 %v1473, 536870912
    %v1475 = vshrl.u32 %v1474, 30
    %v1476 = vshll.u32 %v1475, 30
    %v1477 = vsub.s32 %v1473, %v1476
    %vm1478 = vcmp.lt.s32.totalorder %v1477, 0
    %v1479 = vsub.s32 0, %v1477
    %v1480 = vsel %vm1478, %v1479, %v1477
    %v1481 = vclz %v1480
    %v1482 = vsub.s32 %v1481, 2
    %vm1483 = vcmp.gt.s32.totalorder 0, %v1482
    %v1484 = vsel %vm1483, 0, %v1482
    %v1485 = vsub.s32 32, %v1484
    %v1486 = vshll.u32 %v1477, %v1484
    %v1487 = vshrl.u32 %v1469, %v1485
    %v1488 = vor.u32 %v1486, %v1487
    %v1489 = vsub.s32 4294967266, %v1484
    %v1490 = vadd.s32 %v1489, 127
    %v1491 = vshll.u32 %v1490, 23
    %v1492 = vor.u32 4788187, %v1491
    %v1493 = vand.u32 2147483647, %v1492
    %v1495 = vcvt.s32.f32 %v1488
    %v1496 = vmul.f32 %v1495, %v1493
    %v1497 = vxor.u32 %v1496, 2147483648
    %v1498 = vsel %vm1415, %v1497, %v1496
    %v1499 = vsub.s32 4, %v1475
    %v1500 = vsel %vm1415, %v1499, %v1475
    %v1501 = vsel %vm1414, %v1412, %v1498
    %v1502 = vsel %vm1414, 0, %v1500
    %v1503 = vcosq.f32.pop %v1501
    %v1504 = vsinq.f32.pop %v1501
    %vm1505 = vweird.f32 %v1412
    %v1506 = vadd.s32 %v1502, 3
    %v1507 = vand.u32 %v1506, 3
    %vm1508 = vcmp.lt.s32.totalorder %v1507, 2
    %vm1509 = vcmp.eq.s32.totalorder %v1507, 0
    %v1510 = vxor.u32 %v1504, 2147483648
    %v1511 = vsel %vm1509, %v1503, %v1510
    %vm1512 = vcmp.eq.s32.totalorder %v1507, 2
    %v1513 = vxor.u32 %v1503, 2147483648
    %v1514 = vsel %vm1512, %v1513, %v1504
    %v1515 = vsel %vm1508, %v1511, %v1514
    %v1516 = vsel %vm1505, nan, %v1515
    %v1517 = vstv %s1407
    %v1518 = vmul.f32 %v1517, %v1516
    %v1519 = vadd.f32 %v1405, %v1518
    %s1520 = sld [smem:[#allocation2 + $0xd]]
    %s1521 = sld [smem:[#allocation2 + $0x1d]]
    %s1522 = sld [smem:[#allocation2 + $0x2d]]
    %v1523 = vstv %s1520
    %v1524 = vmul.f32 %v35, %v1523
    %v1525 = vstv %s1522
    %v1526 = vadd.f32 %v1524, %v1525
    %v1527 = vand.u32 2147483647, %v1526
    %vm1528 = vcmp.le.f32.partialorder %v1527, 0.7853982
    %vm1529 = vcmp.lt.s32.totalorder %v1526, 0
    %v1530 = vand.u32 %v1526, 2139095040
    %v1531 = vshrl.u32 %v1530, 23
    %v1532 = vsub.s32 %v1531, 127
    %v1533 = vand.u32 2147483647, %v1526
    %v1534 = vand.u32 %v1533, 8388607
    %v1535 = vor.u32 %v1534, 8388608
    %v1536 = vsub.s32 0, %v1535
    %v1537 = vadd.s32 %v1532, 1
    %vm1538 = vcmp.gt.s32.totalorder %v1537, 0
    %v1539 = vsel %vm1538, %v1537, 0
    %v1540 = vshrl.u32 %v1539, 5
    %v1541 = vand.u32 %v1539, 31
    %v1542 = vsub.s32 32, %v1541
    %v1543 = vshrl.u32 683565275, %v1542
    %v1544 = vshll.u32 683565275, %v1541
    %v1545 = vshrl.u32 2475754826, %v1542
    %v1546 = vor.u32 %v1544, %v1545
    %v1547 = vshll.u32 2475754826, %v1541
    %v1548 = vshrl.u32 2131351028, %v1542
    %v1549 = vor.u32 %v1547, %v1548
    %v1550 = vshll.u32 2131351028, %v1541
    %v1551 = vshrl.u32 2102212464, %v1542
    %v1552 = vor.u32 %v1550, %v1551
    %v1553 = vshll.u32 2102212464, %v1541
    %v1554 = vshrl.u32 920167782, %v1542
    %v1555 = vor.u32 %v1553, %v1554
    %v1556 = vshll.u32 920167782, %v1541
    %v1557 = vshrl.u32 1326507024, %v1542
    %v1558 = vor.u32 %v1556, %v1557
    %vm1559 = vcmp.lt.s32.totalorder %v1540, 1
    %vm1560 = vcmp.lt.s32.totalorder %v1540, 2
    %vm1561 = vcmp.lt.s32.totalorder %v1540, 3
    %vm1562 = vcmp.lt.s32.totalorder %v1540, 4
    %v1563 = vsel %vm1559, %v1543, %v1546
    %v1564 = vsel %vm1562, %v1552, 2102212464
    %v1565 = vsel %vm1561, %v1549, %v1564
    %v1566 = vsel %vm1560, %v1563, %v1565
    %v1567 = vsel %vm1559, %v1546, %v1549
    %v1568 = vsel %vm1562, %v1555, 920167782
    %v1569 = vsel %vm1561, %v1552, %v1568
    %v1570 = vsel %vm1560, %v1567, %v1569
    %v1571 = vsel %vm1559, %v1549, %v1552
    %v1572 = vsel %vm1562, %v1558, 1326507024
    %v1573 = vsel %vm1561, %v1555, %v1572
    %v1574 = vsel %vm1560, %v1571, %v1573
    %v1575 = vshll.u32 %v1535, 8
    %v1576 = vmul.u32.u64.compose %v1575, %v1574
    %v1577 = vextract.low.u32 %v1576
    %v1578 = vextract.high.u32 %v1576
    %v1579 = vmul.u32.u64.compose %v1575, %v1570
    %v1580 = vextract.low.u32 %v1579
    %v1581 = vextract.high.u32 %v1579
    %v1582 = vmul.u32 %v1575, %v1566
    %v1583 = vadd.s32 %v1578, %v1580
    %vm1584 = vc.u32 %v1578, %v1580
    %v1585 = vadd.s32 %v1581, 1
    %v1586 = vsel %vm1584, %v1585, %v1581
    %v1587 = vadd.s32 %v1582, %v1586
    %v1588 = vadd.s32 %v1587, 536870912
    %v1589 = vshrl.u32 %v1588, 30
    %v1590 = vshll.u32 %v1589, 30
    %v1591 = vsub.s32 %v1587, %v1590
    %vm1592 = vcmp.lt.s32.totalorder %v1591, 0
    %v1593 = vsub.s32 0, %v1591
    %v1594 = vsel %vm1592, %v1593, %v1591
    %v1595 = vclz %v1594
    %v1596 = vsub.s32 %v1595, 2
    %vm1597 = vcmp.gt.s32.totalorder 0, %v1596
    %v1598 = vsel %vm1597, 0, %v1596
    %v1599 = vsub.s32 32, %v1598
    %v1600 = vshll.u32 %v1591, %v1598
    %v1601 = vshrl.u32 %v1583, %v1599
    %v1602 = vor.u32 %v1600, %v1601
    %v1603 = vsub.s32 4294967266, %v1598
    %v1604 = vadd.s32 %v1603, 127
    %v1605 = vshll.u32 %v1604, 23
    %v1606 = vor.u32 4788187, %v1605
    %v1607 = vand.u32 2147483647, %v1606
    %v1609 = vcvt.s32.f32 %v1602
    %v1610 = vmul.f32 %v1609, %v1607
    %v1611 = vxor.u32 %v1610, 2147483648
    %v1612 = vsel %vm1529, %v1611, %v1610
    %v1613 = vsub.s32 4, %v1589
    %v1614 = vsel %vm1529, %v1613, %v1589
    %v1615 = vsel %vm1528, %v1526, %v1612
    %v1616 = vsel %vm1528, 0, %v1614
    %v1617 = vcosq.f32.pop %v1615
    %v1618 = vsinq.f32.pop %v1615
    %vm1619 = vweird.f32 %v1526
    %v1620 = vadd.s32 %v1616, 3
    %v1621 = vand.u32 %v1620, 3
    %vm1622 = vcmp.lt.s32.totalorder %v1621, 2
    %vm1623 = vcmp.eq.s32.totalorder %v1621, 0
    %v1624 = vxor.u32 %v1618, 2147483648
    %v1625 = vsel %vm1623, %v1617, %v1624
    %vm1626 = vcmp.eq.s32.totalorder %v1621, 2
    %v1627 = vxor.u32 %v1617, 2147483648
    %v1628 = vsel %vm1626, %v1627, %v1618
    %v1629 = vsel %vm1622, %v1625, %v1628
    %v1630 = vsel %vm1619, nan, %v1629
    %v1631 = vstv %s1521
    %v1632 = vmul.f32 %v1631, %v1630
    %v1633 = vadd.f32 %v1519, %v1632
    %s1634 = sld [smem:[#allocation2 + $0xe]]
    %s1635 = sld [smem:[#allocation2 + $0x1e]]
    %s1636 = sld [smem:[#allocation2 + $0x2e]]
    %v1637 = vstv %s1634
    %v1638 = vmul.f32 %v35, %v1637
    %v1639 = vstv %s1636
    %v1640 = vadd.f32 %v1638, %v1639
    %v1641 = vand.u32 2147483647, %v1640
    %vm1642 = vcmp.le.f32.partialorder %v1641, 0.7853982
    %vm1643 = vcmp.lt.s32.totalorder %v1640, 0
    %v1644 = vand.u32 %v1640, 2139095040
    %v1645 = vshrl.u32 %v1644, 23
    %v1646 = vsub.s32 %v1645, 127
    %v1647 = vand.u32 2147483647, %v1640
    %v1648 = vand.u32 %v1647, 8388607
    %v1649 = vor.u32 %v1648, 8388608
    %v1650 = vsub.s32 0, %v1649
    %v1651 = vadd.s32 %v1646, 1
    %vm1652 = vcmp.gt.s32.totalorder %v1651, 0
    %v1653 = vsel %vm1652, %v1651, 0
    %v1654 = vshrl.u32 %v1653, 5
    %v1655 = vand.u32 %v1653, 31
    %v1656 = vsub.s32 32, %v1655
    %v1657 = vshrl.u32 683565275, %v1656
    %v1658 = vshll.u32 683565275, %v1655
    %v1659 = vshrl.u32 2475754826, %v1656
    %v1660 = vor.u32 %v1658, %v1659
    %v1661 = vshll.u32 2475754826, %v1655
    %v1662 = vshrl.u32 2131351028, %v1656
    %v1663 = vor.u32 %v1661, %v1662
    %v1664 = vshll.u32 2131351028, %v1655
    %v1665 = vshrl.u32 2102212464, %v1656
    %v1666 = vor.u32 %v1664, %v1665
    %v1667 = vshll.u32 2102212464, %v1655
    %v1668 = vshrl.u32 920167782, %v1656
    %v1669 = vor.u32 %v1667, %v1668
    %v1670 = vshll.u32 920167782, %v1655
    %v1671 = vshrl.u32 1326507024, %v1656
    %v1672 = vor.u32 %v1670, %v1671
    %vm1673 = vcmp.lt.s32.totalorder %v1654, 1
    %vm1674 = vcmp.lt.s32.totalorder %v1654, 2
    %vm1675 = vcmp.lt.s32.totalorder %v1654, 3
    %vm1676 = vcmp.lt.s32.totalorder %v1654, 4
    %v1677 = vsel %vm1673, %v1657, %v1660
    %v1678 = vsel %vm1676, %v1666, 2102212464
    %v1679 = vsel %vm1675, %v1663, %v1678
    %v1680 = vsel %vm1674, %v1677, %v1679
    %v1681 = vsel %vm1673, %v1660, %v1663
    %v1682 = vsel %vm1676, %v1669, 920167782
    %v1683 = vsel %vm1675, %v1666, %v1682
    %v1684 = vsel %vm1674, %v1681, %v1683
    %v1685 = vsel %vm1673, %v1663, %v1666
    %v1686 = vsel %vm1676, %v1672, 1326507024
    %v1687 = vsel %vm1675, %v1669, %v1686
    %v1688 = vsel %vm1674, %v1685, %v1687
    %v1689 = vshll.u32 %v1649, 8
    %v1690 = vmul.u32.u64.compose %v1689, %v1688
    %v1691 = vextract.low.u32 %v1690
    %v1692 = vextract.high.u32 %v1690
    %v1693 = vmul.u32.u64.compose %v1689, %v1684
    %v1694 = vextract.low.u32 %v1693
    %v1695 = vextract.high.u32 %v1693
    %v1696 = vmul.u32 %v1689, %v1680
    %v1697 = vadd.s32 %v1692, %v1694
    %vm1698 = vc.u32 %v1692, %v1694
    %v1699 = vadd.s32 %v1695, 1
    %v1700 = vsel %vm1698, %v1699, %v1695
    %v1701 = vadd.s32 %v1696, %v1700
    %v1702 = vadd.s32 %v1701, 536870912
    %v1703 = vshrl.u32 %v1702, 30
    %v1704 = vshll.u32 %v1703, 30
    %v1705 = vsub.s32 %v1701, %v1704
    %vm1706 = vcmp.lt.s32.totalorder %v1705, 0
    %v1707 = vsub.s32 0, %v1705
    %v1708 = vsel %vm1706, %v1707, %v1705
    %v1709 = vclz %v1708
    %v1710 = vsub.s32 %v1709, 2
    %vm1711 = vcmp.gt.s32.totalorder 0, %v1710
    %v1712 = vsel %vm1711, 0, %v1710
    %v1713 = vsub.s32 32, %v1712
    %v1714 = vshll.u32 %v1705, %v1712
    %v1715 = vshrl.u32 %v1697, %v1713
    %v1716 = vor.u32 %v1714, %v1715
    %v1717 = vsub.s32 4294967266, %v1712
    %v1718 = vadd.s32 %v1717, 127
    %v1719 = vshll.u32 %v1718, 23
    %v1720 = vor.u32 4788187, %v1719
    %v1721 = vand.u32 2147483647, %v1720
    %v1723 = vcvt.s32.f32 %v1716
    %v1724 = vmul.f32 %v1723, %v1721
    %v1725 = vxor.u32 %v1724, 2147483648
    %v1726 = vsel %vm1643, %v1725, %v1724
    %v1727 = vsub.s32 4, %v1703
    %v1728 = vsel %vm1643, %v1727, %v1703
    %v1729 = vsel %vm1642, %v1640, %v1726
    %v1730 = vsel %vm1642, 0, %v1728
    %v1731 = vcosq.f32.pop %v1729
    %v1732 = vsinq.f32.pop %v1729
    %vm1733 = vweird.f32 %v1640
    %v1734 = vadd.s32 %v1730, 3
    %v1735 = vand.u32 %v1734, 3
    %vm1736 = vcmp.lt.s32.totalorder %v1735, 2
    %vm1737 = vcmp.eq.s32.totalorder %v1735, 0
    %v1738 = vxor.u32 %v1732, 2147483648
    %v1739 = vsel %vm1737, %v1731, %v1738
    %vm1740 = vcmp.eq.s32.totalorder %v1735, 2
    %v1741 = vxor.u32 %v1731, 2147483648
    %v1742 = vsel %vm1740, %v1741, %v1732
    %v1743 = vsel %vm1736, %v1739, %v1742
    %v1744 = vsel %vm1733, nan, %v1743
    %v1745 = vstv %s1635
    %v1746 = vmul.f32 %v1745, %v1744
    %v1747 = vadd.f32 %v1633, %v1746
    %s1748 = sld [smem:[#allocation2 + $0xf]]
    %s1749 = sld [smem:[#allocation2 + $0x1f]]
    %s1750 = sld [smem:[#allocation2 + $0x2f]]
    %v1751 = vstv %s1748
    %v1752 = vmul.f32 %v35, %v1751
    %v1753 = vstv %s1750
    %v1754 = vadd.f32 %v1752, %v1753
    %v1755 = vand.u32 2147483647, %v1754
    %vm1756 = vcmp.le.f32.partialorder %v1755, 0.7853982
    %vm1757 = vcmp.lt.s32.totalorder %v1754, 0
    %v1758 = vand.u32 %v1754, 2139095040
    %v1759 = vshrl.u32 %v1758, 23
    %v1760 = vsub.s32 %v1759, 127
    %v1761 = vand.u32 2147483647, %v1754
    %v1762 = vand.u32 %v1761, 8388607
    %v1763 = vor.u32 %v1762, 8388608
    %v1764 = vsub.s32 0, %v1763
    %v1765 = vadd.s32 %v1760, 1
    %vm1766 = vcmp.gt.s32.totalorder %v1765, 0
    %v1767 = vsel %vm1766, %v1765, 0
    %v1768 = vshrl.u32 %v1767, 5
    %v1769 = vand.u32 %v1767, 31
    %v1770 = vsub.s32 32, %v1769
    %v1771 = vshrl.u32 683565275, %v1770
    %v1772 = vshll.u32 683565275, %v1769
    %v1773 = vshrl.u32 2475754826, %v1770
    %v1774 = vor.u32 %v1772, %v1773
    %v1775 = vshll.u32 2475754826, %v1769
    %v1776 = vshrl.u32 2131351028, %v1770
    %v1777 = vor.u32 %v1775, %v1776
    %v1778 = vshll.u32 2131351028, %v1769
    %v1779 = vshrl.u32 2102212464, %v1770
    %v1780 = vor.u32 %v1778, %v1779
    %v1781 = vshll.u32 2102212464, %v1769
    %v1782 = vshrl.u32 920167782, %v1770
    %v1783 = vor.u32 %v1781, %v1782
    %v1784 = vshll.u32 920167782, %v1769
    %v1785 = vshrl.u32 1326507024, %v1770
    %v1786 = vor.u32 %v1784, %v1785
    %vm1787 = vcmp.lt.s32.totalorder %v1768, 1
    %vm1788 = vcmp.lt.s32.totalorder %v1768, 2
    %vm1789 = vcmp.lt.s32.totalorder %v1768, 3
    %vm1790 = vcmp.lt.s32.totalorder %v1768, 4
    %v1791 = vsel %vm1787, %v1771, %v1774
    %v1792 = vsel %vm1790, %v1780, 2102212464
    %v1793 = vsel %vm1789, %v1777, %v1792
    %v1794 = vsel %vm1788, %v1791, %v1793
    %v1795 = vsel %vm1787, %v1774, %v1777
    %v1796 = vsel %vm1790, %v1783, 920167782
    %v1797 = vsel %vm1789, %v1780, %v1796
    %v1798 = vsel %vm1788, %v1795, %v1797
    %v1799 = vsel %vm1787, %v1777, %v1780
    %v1800 = vsel %vm1790, %v1786, 1326507024
    %v1801 = vsel %vm1789, %v1783, %v1800
    %v1802 = vsel %vm1788, %v1799, %v1801
    %v1803 = vshll.u32 %v1763, 8
    %v1804 = vmul.u32.u64.compose %v1803, %v1802
    %v1805 = vextract.low.u32 %v1804
    %v1806 = vextract.high.u32 %v1804
    %v1807 = vmul.u32.u64.compose %v1803, %v1798
    %v1808 = vextract.low.u32 %v1807
    %v1809 = vextract.high.u32 %v1807
    %v1810 = vmul.u32 %v1803, %v1794
    %v1811 = vadd.s32 %v1806, %v1808
    %vm1812 = vc.u32 %v1806, %v1808
    %v1813 = vadd.s32 %v1809, 1
    %v1814 = vsel %vm1812, %v1813, %v1809
    %v1815 = vadd.s32 %v1810, %v1814
    %v1816 = vadd.s32 %v1815, 536870912
    %v1817 = vshrl.u32 %v1816, 30
    %v1818 = vshll.u32 %v1817, 30
    %v1819 = vsub.s32 %v1815, %v1818
    %vm1820 = vcmp.lt.s32.totalorder %v1819, 0
    %v1821 = vsub.s32 0, %v1819
    %v1822 = vsel %vm1820, %v1821, %v1819
    %v1823 = vclz %v1822
    %v1824 = vsub.s32 %v1823, 2
    %vm1825 = vcmp.gt.s32.totalorder 0, %v1824
    %v1826 = vsel %vm1825, 0, %v1824
    %v1827 = vsub.s32 32, %v1826
    %v1828 = vshll.u32 %v1819, %v1826
    %v1829 = vshrl.u32 %v1811, %v1827
    %v1830 = vor.u32 %v1828, %v1829
    %v1831 = vsub.s32 4294967266, %v1826
    %v1832 = vadd.s32 %v1831, 127
    %v1833 = vshll.u32 %v1832, 23
    %v1834 = vor.u32 4788187, %v1833
    %v1835 = vand.u32 2147483647, %v1834
    %v1837 = vcvt.s32.f32 %v1830
    %v1838 = vmul.f32 %v1837, %v1835
    %v1839 = vxor.u32 %v1838, 2147483648
    %v1840 = vsel %vm1757, %v1839, %v1838
    %v1841 = vsub.s32 4, %v1817
    %v1842 = vsel %vm1757, %v1841, %v1817
    %v1843 = vsel %vm1756, %v1754, %v1840
    %v1844 = vsel %vm1756, 0, %v1842
    %v1845 = vcosq.f32.pop %v1843
    %v1846 = vsinq.f32.pop %v1843
    %vm1847 = vweird.f32 %v1754
    %v1848 = vadd.s32 %v1844, 3
    %v1849 = vand.u32 %v1848, 3
    %vm1850 = vcmp.lt.s32.totalorder %v1849, 2
    %vm1851 = vcmp.eq.s32.totalorder %v1849, 0
    %v1852 = vxor.u32 %v1846, 2147483648
    %v1853 = vsel %vm1851, %v1845, %v1852
    %vm1854 = vcmp.eq.s32.totalorder %v1849, 2
    %v1855 = vxor.u32 %v1845, 2147483648
    %v1856 = vsel %vm1854, %v1855, %v1846
    %v1857 = vsel %vm1850, %v1853, %v1856
    %v1858 = vsel %vm1847, nan, %v1857
    %v1859 = vstv %s1749
    %v1860 = vmul.f32 %v1859, %v1858
    %v1861 = vadd.f32 %v1747, %v1860
    %1862 = vst [vmem:[#allocation7] sm:$0xff] %v1861
    // Predicated region
    $region18: #{tpu_custom_call.1} parent=1 // pred_check
      _
    $region19: #{tpu_custom_call.1} parent=1 // pred_check_branch
      %1864 = sbr.rel (0) target = $region21
    $region20: #{tpu_custom_call.1} parent=1 // pred_region
      %s1866 = ssub.s32 128, 128
      %1867 = vsyncadd [#allocation4], %s1866
      %s1869 = sshll.u32 [#allocation7], 4
      %s1870 = int_to_ptr.vmem [resolvable:$true] %s1869
      %1872 = dma.vmem_to_hbm [thread:$0]  %s1870, 128, %s2, [#allocation4]
    $region21: #{tpu_custom_call.1} parent=1 // pred_fallthru
      _
    // Predicated region
    $region22: #{tpu_custom_call.1} parent=1 // pred_check
      _
    $region23: #{tpu_custom_call.1} parent=1 // pred_check_branch
      %1874 = sbr.rel (0) target = $region25
    $region24: #{tpu_custom_call.1} parent=1 // pred_region
      %1875 = dma.done [#allocation4], 128
    $region25: #{tpu_custom_call.1} parent=1 // pred_fallthru
      _
    %1876 = vsyncpa [#allocation3], 1
    %1877 = vsyncpa [#allocation4], 1
    %1878 = vsyncpa [#allocation5], 1

</llo_original>
